<compile_context>
chip_gen: v6e
topology: v6e:2x2x1
jax: 0.10.0
libtpu: 0.0.40
codegen_flags: <defaults>
</compile_context>

<pallas_src>
import jax
import jax.numpy as jnp
from jax.experimental import pallas as pl
from jax.experimental.pallas import tpu as pltpu


def _upsam2_kernel(x_ref, w1_ref, b1_ref, w2_ref, b2_ref, o_ref):
    # x_ref : (tile_r, fold*Cin)            packed voxels (bf16 or f32)
    # w1_ref: (fold*Cin, fold*Cout)         block-diagonal 1x1x1 conv weight
    # b1_ref: (1, fold*Cout)                f32
    # w2_ref: (fold*Cout, fold*8*Cout)      block-diagonal transpose-conv weight
    # b2_ref: (1, fold*8*Cout)              f32
    # o_ref : (tile_r, fold*8*Cout)         f32, lane-dense (>=512, %128==0)
    x = x_ref[...]
    y = jnp.dot(x, w1_ref[...], preferred_element_type=jnp.float32) + b1_ref[...]
    y = jnp.maximum(y, 0.0)
    z = jnp.dot(y.astype(w2_ref.dtype), w2_ref[...],
                preferred_element_type=jnp.float32) + b2_ref[...]
    o_ref[...] = jnp.maximum(z, 0.0)


def _block_diag(m, f):
    """(a, b) -> (f*a, f*b) block-diagonal with f copies of m."""
    if f == 1:
        return m
    a, b = m.shape
    eye = jnp.eye(f, dtype=m.dtype)
    return (eye[:, None, :, None] * m[None, :, None, :]).reshape(f * a, f * b)


def upsam2_channels_last(x_ndhwc, w1, b1, w2, b2, *,
                         tile_voxels=2048, use_bf16_inputs=True):
    """Channels-last core: (N, D, H, W, Cin) -> (N, 2D, 2H, 2W, Cout)."""
    N, D, H, W, Cin = x_ndhwc.shape
    Cout = w1.shape[0]
    M = N * D * H * W

    # --- fold factor so the output row is lane-dense (>=512 and %128 == 0) ---
    fold = 1
    while (fold * 8 * Cout) % 128 != 0 or (fold * 8 * Cout) < 512:
        fold += 1
        if fold > 256:   # safety for degenerate channel counts
            break

    # --- tile sizing: big blocks, sublane-aligned, never larger than problem ---
    rows = -(-M // fold)                                   # voxels / fold, ceil
    tile_r = max(8, min((tile_voxels // fold) // 8 * 8, -(-rows // 8) * 8))
    R = -(-rows // tile_r) * tile_r                        # padded row count
    M_pad = R * fold

    # --- wrapper-side packing (reshape of contiguous buffers; no transpose) ---
    x_flat = x_ndhwc.reshape(M, Cin)
    if M_pad > M:
        x_flat = jnp.pad(x_flat, ((0, M_pad - M), (0, 0)))
    x_wide = x_flat.reshape(R, fold * Cin)

    w1_mat = w1.reshape(Cout, Cin).T                            # (Cin, Cout)
    w2_mat = jnp.transpose(w2, (0, 2, 3, 4, 1)).reshape(Cout, 8 * Cout)
    w1_blk = _block_diag(w1_mat, fold)                          # (fold*Cin, fold*Cout)
    w2_blk = _block_diag(w2_mat, fold)                          # (fold*Cout, fold*8*Cout)
    b1_row = jnp.tile(b1, fold).reshape(1, fold * Cout).astype(jnp.float32)
    b2_row = jnp.tile(b2, 8 * fold).reshape(1, fold * 8 * Cout).astype(jnp.float32)

    in_dtype = jnp.bfloat16 if use_bf16_inputs else jnp.float32
    xk = x_wide.astype(in_dtype)
    w1k = w1_blk.astype(in_dtype)
    w2k = w2_blk.astype(in_dtype)

    # --- VMEM budget: 2x-buffered in/out blocks + resident weights + slack ---
    isz = 2 if use_bf16_inputs else 4
    blk_in = tile_r * fold * Cin * isz
    blk_out = tile_r * fold * 8 * Cout * 4
    wgt = (fold * Cin * fold * Cout + fold * Cout * fold * 8 * Cout) * isz
    bias = (fold * Cout + fold * 8 * Cout) * 4
    need = 2 * (blk_in + blk_out) + 2 * (wgt + bias) + 2 * blk_out
    vmem_limit = int(min(max(2 * need, 16 * 1024 * 1024), 48 * 1024 * 1024))

    grid = (R // tile_r,)

    out_wide = pl.pallas_call(
        _upsam2_kernel,
        out_shape=jax.ShapeDtypeStruct((R, fold * 8 * Cout), jnp.float32),
        grid=grid,
        in_specs=[
            pl.BlockSpec((tile_r, fold * Cin), lambda i: (i, 0)),
            pl.BlockSpec((fold * Cin, fold * Cout), lambda i: (0, 0)),
            pl.BlockSpec((1, fold * Cout), lambda i: (0, 0)),
            pl.BlockSpec((fold * Cout, fold * 8 * Cout), lambda i: (0, 0)),
            pl.BlockSpec((1, fold * 8 * Cout), lambda i: (0, 0)),
        ],
        out_specs=pl.BlockSpec((tile_r, fold * 8 * Cout), lambda i: (i, 0)),
        compiler_params=pltpu.CompilerParams(
            dimension_semantics=("parallel",),
            vmem_limit_bytes=vmem_limit,
        ),
    )(xk, w1k, b1_row, w2k, b2_row)

    # --- scatter sub-voxels to the doubled spatial grid (channels-last) ---
    out_flat = out_wide.reshape(M_pad, 8 * Cout)[:M]
    z = out_flat.reshape(N, D, H, W, 2, 2, 2, Cout)
    z = jnp.transpose(z, (0, 1, 4, 2, 5, 3, 6, 7))     # (N, D, kd, H, kh, W, kw, C)
    return z.reshape(N, 2 * D, 2 * H, 2 * W, Cout)


def upsam2(x_ncdhw, w1, b1, w2, b2, **kwargs):
    """PyTorch-layout adapter: (N, Cin, D, H, W) -> (N, Cout, 2D, 2H, 2W).

    Keep the surrounding model channels-last and call `upsam2_channels_last`
    directly to avoid these two boundary transposes.
    """
    x_cl = jnp.transpose(x_ncdhw, (0, 2, 3, 4, 1))
    out_cl = upsam2_channels_last(x_cl, w1, b1, w2, b2, **kwargs)
    return jnp.transpose(out_cl, (0, 4, 1, 2, 3))


def _reference(x, w1, b1, w2, b2):
    """Pure-JAX reference mirroring the PyTorch module (f32)."""
    N, Cin, D, H, W = x.shape
    Cout = w1.shape[0]
    y = jnp.einsum("ncdhw,oc->nodhw", x, w1.reshape(Cout, Cin)) \
        + b1[None, :, None, None, None]
    y = jnp.maximum(y, 0.0)
    # ConvTranspose3d k=2 s=2: out[n,o,2d+kd,2h+kh,2w+kw] = sum_c y[n,c,d,h,w]*w2[c,o,kd,kh,kw]
    z = jnp.einsum("ncdhw,coijk->nodihjwk", y, w2)
    z = z.reshape(N, Cout, 2 * D, 2 * H, 2 * W) + b2[None, :, None, None, None]
    return jnp.maximum(z, 0.0)


if __name__ == "__main__":
    key = jax.random.PRNGKey(0)
    k0, k1, k2, k3, k4 = jax.random.split(key, 5)

    N, Cin, Cout = 2, 4, 8
    D = H = W = 16                      # M = 2*16*16*16 = 8192 voxels, grid = 4

    x = jax.random.normal(k0, (N, Cin, D, H, W), dtype=jnp.float32)
    w1 = 0.1 * jax.random.normal(k1, (Cout, Cin, 1, 1, 1), dtype=jnp.float32)
    b1 = 0.1 * jax.random.normal(k2, (Cout,), dtype=jnp.float32)
    w2 = 0.1 * jax.random.normal(k3, (Cout, Cout, 2, 2, 2), dtype=jnp.float32)
    b2 = 0.1 * jax.random.normal(k4, (Cout,), dtype=jnp.float32)

    ref = _reference(x, w1, b1, w2, b2)

    # Exact-semantics f32 path.
    out_f32 = upsam2(x, w1, b1, w2, b2, use_bf16_inputs=False)
    jax.block_until_ready(out_f32)
    assert out_f32.shape == (N, Cout, 2 * D, 2 * H, 2 * W), out_f32.shape
    assert jnp.allclose(out_f32, ref, atol=1e-4, rtol=1e-4), "f32 path mismatch"

    # Default fast path: bf16 DMA/matmul inputs, f32 accumulate/output.
    out = upsam2(x, w1, b1, w2, b2)
    jax.block_until_ready(out)
    assert out.shape == (N, Cout, 2 * D, 2 * H, 2 * W), out.shape
    assert jnp.allclose(out, ref, atol=2e-2, rtol=2e-2), "bf16-I/O path mismatch"

    print("KERNEL_OK")
</pallas_src>

<mosaic_0001>
module attributes {stable_mosaic.version = 11 : i64} {
  func.func @_upsam2_kernel(%arg0: i32, %arg1: memref<256x32xf32, #tpu.memory_space<vmem>>, %arg2: memref<32x64xf32, #tpu.memory_space<vmem>>, %arg3: memref<1x64xf32, #tpu.memory_space<vmem>>, %arg4: memref<64x512xf32, #tpu.memory_space<vmem>>, %arg5: memref<1x512xf32, #tpu.memory_space<vmem>>, %arg6: memref<256x512xf32, #tpu.memory_space<vmem>>) attributes {dimension_semantics = [#tpu.dimension_semantics<parallel>], iteration_bounds = array<i64: 4>, scalar_prefetch = 0 : i64, scratch_operands = 0 : i64, tpu.core_type = #tpu.core_type<tc>, window_params = [{transform_indices = @transform_0, window_bounds = array<i64: 256, 32>}, {pipeline_mode = #tpu.pipeline_mode<synchronous>, transform_indices = @transform_1, window_bounds = array<i64: 32, 64>}, {pipeline_mode = #tpu.pipeline_mode<synchronous>, transform_indices = @transform_2, window_bounds = array<i64: 1, 64>}, {pipeline_mode = #tpu.pipeline_mode<synchronous>, transform_indices = @transform_3, window_bounds = array<i64: 64, 512>}, {pipeline_mode = #tpu.pipeline_mode<synchronous>, transform_indices = @transform_4, window_bounds = array<i64: 1, 512>}, {transform_indices = @transform_5, window_bounds = array<i64: 256, 512>}]} {
    %c0 = arith.constant 0 : index
    %c0_0 = arith.constant 0 : index
    %0 = vector.load %arg1[%c0, %c0_0] : memref<256x32xf32, #tpu.memory_space<vmem>>, vector<256x32xf32>
    %c0_1 = arith.constant 0 : index
    %c0_2 = arith.constant 0 : index
    %1 = vector.load %arg2[%c0_1, %c0_2] : memref<32x64xf32, #tpu.memory_space<vmem>>, vector<32x64xf32>
    %cst = arith.constant dense<0.000000e+00> : vector<256x64xf32>
    %2 = tpu.matmul %0, %1, %cst {dimension_numbers = #tpu.dot_dimension_numbers<[1], [0], [0], [1], [0, 0, 1, 1], [], []>} : vector<256x32xf32>, vector<32x64xf32>, vector<256x64xf32> -> vector<256x64xf32>
    %c0_3 = arith.constant 0 : index
    %c0_4 = arith.constant 0 : index
    %3 = vector.load %arg3[%c0_3, %c0_4] : memref<1x64xf32, #tpu.memory_space<vmem>>, vector<1x64xf32>
    %4 = vector.broadcast %3 : vector<1x64xf32> to vector<256x64xf32>
    %5 = arith.addf %2, %4 : vector<256x64xf32>
    %cst_5 = arith.constant 0.000000e+00 : f32
    %6 = vector.broadcast %cst_5 : f32 to vector<256x64xf32>
    %7 = arith.maximumf %5, %6 : vector<256x64xf32>
    %c0_6 = arith.constant 0 : index
    %c0_7 = arith.constant 0 : index
    %8 = vector.load %arg4[%c0_6, %c0_7] : memref<64x512xf32, #tpu.memory_space<vmem>>, vector<64x512xf32>
    %cst_8 = arith.constant dense<0.000000e+00> : vector<256x512xf32>
    %9 = tpu.matmul %7, %8, %cst_8 {dimension_numbers = #tpu.dot_dimension_numbers<[1], [0], [0], [1], [0, 0, 1, 1], [], []>} : vector<256x64xf32>, vector<64x512xf32>, vector<256x512xf32> -> vector<256x512xf32>
    %c0_9 = arith.constant 0 : index
    %c0_10 = arith.constant 0 : index
    %10 = vector.load %arg5[%c0_9, %c0_10] : memref<1x512xf32, #tpu.memory_space<vmem>>, vector<1x512xf32>
    %11 = vector.broadcast %10 : vector<1x512xf32> to vector<256x512xf32>
    %12 = arith.addf %9, %11 : vector<256x512xf32>
    %cst_11 = arith.constant 0.000000e+00 : f32
    %13 = vector.broadcast %cst_11 : f32 to vector<256x512xf32>
    %14 = arith.maximumf %12, %13 : vector<256x512xf32>
    %c0_12 = arith.constant 0 : index
    %c0_13 = arith.constant 0 : index
    %15 = vector.load %arg6[%c0_12, %c0_13] : memref<256x512xf32, #tpu.memory_space<vmem>>, vector<256x512xf32>
    tpu.vector_store %arg6[%c0_12, %c0_13], %14 {strides = array<i32>} : memref<256x512xf32, #tpu.memory_space<vmem>>, vector<256x512xf32>,
    return
  }
  func.func @transform_0(%arg0: i32) -> (i32, i32) {
    %c0_i32 = arith.constant 0 : i32
    %c0_i32_0 = arith.constant 0 : i32
    return %arg0, %c0_i32 : i32, i32
  }
  func.func @transform_1(%arg0: i32) -> (i32, i32) {
    %c0_i32 = arith.constant 0 : i32
    %c0_i32_0 = arith.constant 0 : i32
    %c0_i32_1 = arith.constant 0 : i32
    return %c0_i32, %c0_i32_0 : i32, i32
  }
  func.func @transform_2(%arg0: i32) -> (i32, i32) {
    %c0_i32 = arith.constant 0 : i32
    %c0_i32_0 = arith.constant 0 : i32
    %c0_i32_1 = arith.constant 0 : i32
    return %c0_i32, %c0_i32_0 : i32, i32
  }
  func.func @transform_3(%arg0: i32) -> (i32, i32) {
    %c0_i32 = arith.constant 0 : i32
    %c0_i32_0 = arith.constant 0 : i32
    %c0_i32_1 = arith.constant 0 : i32
    return %c0_i32, %c0_i32_0 : i32, i32
  }
  func.func @transform_4(%arg0: i32) -> (i32, i32) {
    %c0_i32 = arith.constant 0 : i32
    %c0_i32_0 = arith.constant 0 : i32
    %c0_i32_1 = arith.constant 0 : i32
    return %c0_i32, %c0_i32_0 : i32, i32
  }
  func.func @transform_5(%arg0: i32) -> (i32, i32) {
    %c0_i32 = arith.constant 0 : i32
    %c0_i32_0 = arith.constant 0 : i32
    return %arg0, %c0_i32 : i32, i32
  }
}

</mosaic_0001>

<llo_original>
// kernel: tpu_custom_call.1
$region0: #{tpu_custom_call.1}
  #allocation0 [shape = 'u32[]', space=smem, size = 0x4, offset = 0x4, fixed_abs, tag = 'smem constant byte address 0x4 - core index']
  #allocation1 [shape = 'u32[144,128]{1,0:T(1,128)}', space=vmem, size = 0x12000, scoped, tag = 'internal scratch']
  %s0 = inlined_call_operand.vmem [shape: f32[1024,32], index: 0, kind: input, shape index: {}]
  %s1 = inlined_call_operand.hbm [shape: f32[32,64], index: 1, kind: input, shape index: {}]
  %s2 = inlined_call_operand.hbm [shape: f32[1,64], index: 2, kind: input, shape index: {}]
  %s3 = inlined_call_operand.hbm [shape: f32[64,512], index: 3, kind: input, shape index: {}]
  %s4 = inlined_call_operand.hbm [shape: f32[1,512], index: 4, kind: input, shape index: {}]
  %s5 = inlined_call_operand.hbm [shape: f32[1024,512], index: 5, kind: output, shape index: {}]
  %s6 = sld [smem:[#allocation0]]
  $region69: #{tpu_custom_call.1} parent=0
    _
  %s8 = ssub.s32 1, %s6
  %s9 = scalar_select 0, %s8, %s6
  $region1: #{tpu_custom_call.1} parent=0
    #allocation2 [shape = 'u8[16384]{0}', space=vmem, size = 0x4000, scoped, tag = 'input window, operand 1, single buffered']
    #allocation3 [shape = 's32[2]{0}', space=sflag, size = 0x8, scoped, tag = 'scoped memory for tpu_custom_call.1']
    #allocation4 [shape = 's32[2]{0}', space=sflag, size = 0x8, scoped, tag = 'scoped memory for tpu_custom_call.1']
    #allocation5 [shape = 'u8[512]{0}', space=vmem, size = 0x400, scoped, tag = 'input window, operand 2, single buffered']
    #allocation6 [shape = 's32[1]{0}', space=sflag, size = 0x4, scoped, tag = 'scoped memory for tpu_custom_call.1']
    #allocation7 [shape = 'u8[131072]{0}', space=vmem, size = 0x20000, scoped, tag = 'input window, operand 3, single buffered']
    #allocation8 [shape = 'u8[2048]{0}', space=vmem, size = 0x800, scoped, tag = 'input window, operand 4, single buffered']
    #allocation9 [shape = 's32[1]{0}', space=sflag, size = 0x4, scoped, tag = 'scoped memory for tpu_custom_call.1']
    #allocation10 [shape = 'u8[1048576]{0}', space=vmem, size = 0x100000, scoped, tag = 'output window, operand 0']
    %10 = vsyncpa [#allocation3], 0
    %11 = vsyncpa [#allocation6], 0
    %12 = vsyncpa [#allocation9], 0
    %13 = vsyncpa [#allocation4], 0
    %s14 = scalar_lea.sflag [#allocation4], 1
    %15 = vsyncpa %s14, 0
    loop: start=0, step=1, limit=6
    $region2: #{tpu_custom_call.1} parent=1 // loop_pre_header
      _
    $region3: #{tpu_custom_call.1} parent=1 // loop_header
      %s17 = sphi 0, %s21
      %p18 = scmp.ge.s32.totalorder %s17, 6
      %s27 = sphi 0, %s29
      %s30 = sphi 0, %s27
      %s31 = sphi 0, %s30
      %s47 = sphi 0, %s31
      %s51 = sphi 0, %s51
      %s53 = sphi 0, %s51
      %s54 = sphi 0, %s53
      %s68 = sphi 0, %s54
      %s72 = sphi 0, %s72
      %s74 = sphi 0, %s72
      %s75 = sphi 0, %s74
      %s89 = sphi 0, %s75
      %s93 = sphi 0, %s93
      %s95 = sphi 0, %s93
      %s96 = sphi 0, %s95
      %s110 = sphi 0, %s96
      %s114 = sphi 0, %s114
      %s116 = sphi 0, %s114
      %s117 = sphi 0, %s116
      %s131 = sphi 0, %s117
      %s137 = sphi 0, %s139
      %s140 = sphi 0, %s137
      %s141 = sphi 0, %s140
      %s157 = sphi 0, %s141
    $region4: #{tpu_custom_call.1} parent=1 // loop_header_branch
      %20 = sbr.rel (%p18) target = $region8
    $region5: #{tpu_custom_call.1} parent=1 // loop_body
      %s22 = ssub.s32 %s17, 1
      %s23 = ssub.s32 %s17, 2
      %s24 = sadd.s32 %s17, 1
      %s25 = ssub.s32 %s17, %s24
      %p26 = scmp.eq.s32.totalorder %s25, 0
      %s28 = sadd.s32 %s27, 1
      %s29 = scalar_select %p26, %s27, %s28
      %p32 = pneg %p26
      %p33 = scmp.eq.s32.totalorder %s17, 3
      %p34 = por %p32, %p33
      %p35 = scmp.ne.s32.totalorder %s27, %s30
      %p36 = scmp.eq.s32.totalorder %s17, 0
      %p37 = por %p35, %p36
      %p38 = scmp.ne.s32.totalorder %s27, %s30
      %p39 = scmp.eq.s32.totalorder %s22, 3
      %p40 = por %p38, %p39
      %p41 = scmp.ne.s32.totalorder %s30, %s31
      %p42 = scmp.eq.s32.totalorder %s22, 0
      %p43 = por %p41, %p42
      %p44 = scmp.ne.s32.totalorder %s30, %s31
      %p45 = scmp.eq.s32.totalorder %s23, 3
      %p46 = por %p44, %p45
      %p48 = scmp.ne.s32.totalorder %s31, %s47
      %p49 = scmp.eq.s32.totalorder %s23, 0
      %p50 = por %p48, %p49
      %s52 = sadd.s32 %s51, 1
      %p55 = scmp.eq.s32.totalorder %s17, 3
      %p56 = scmp.ne.s32.totalorder %s51, %s53
      %p57 = scmp.eq.s32.totalorder %s17, 0
      %p58 = por %p56, %p57
      %p59 = scmp.ne.s32.totalorder %s51, %s53
      %p60 = scmp.eq.s32.totalorder %s22, 3
      %p61 = por %p59, %p60
      %p62 = scmp.ne.s32.totalorder %s53, %s54
      %p63 = scmp.eq.s32.totalorder %s22, 0
      %p64 = por %p62, %p63
      %p65 = scmp.ne.s32.totalorder %s53, %s54
      %p66 = scmp.eq.s32.totalorder %s23, 3
      %p67 = por %p65, %p66
      %p69 = scmp.ne.s32.totalorder %s54, %s68
      %p70 = scmp.eq.s32.totalorder %s23, 0
      %p71 = por %p69, %p70
      %s73 = sadd.s32 %s72, 1
      %p76 = scmp.eq.s32.totalorder %s17, 3
      %p77 = scmp.ne.s32.totalorder %s72, %s74
      %p78 = scmp.eq.s32.totalorder %s17, 0
      %p79 = por %p77, %p78
      %p80 = scmp.ne.s32.totalorder %s72, %s74
      %p81 = scmp.eq.s32.totalorder %s22, 3
      %p82 = por %p80, %p81
      %p83 = scmp.ne.s32.totalorder %s74, %s75
      %p84 = scmp.eq.s32.totalorder %s22, 0
      %p85 = por %p83, %p84
      %p86 = scmp.ne.s32.totalorder %s74, %s75
      %p87 = scmp.eq.s32.totalorder %s23, 3
      %p88 = por %p86, %p87
      %p90 = scmp.ne.s32.totalorder %s75, %s89
      %p91 = scmp.eq.s32.totalorder %s23, 0
      %p92 = por %p90, %p91
      %s94 = sadd.s32 %s93, 1
      %p97 = scmp.eq.s32.totalorder %s17, 3
      %p98 = scmp.ne.s32.totalorder %s93, %s95
      %p99 = scmp.eq.s32.totalorder %s17, 0
      %p100 = por %p98, %p99
      %p101 = scmp.ne.s32.totalorder %s93, %s95
      %p102 = scmp.eq.s32.totalorder %s22, 3
      %p103 = por %p101, %p102
      %p104 = scmp.ne.s32.totalorder %s95, %s96
      %p105 = scmp.eq.s32.totalorder %s22, 0
      %p106 = por %p104, %p105
      %p107 = scmp.ne.s32.totalorder %s95, %s96
      %p108 = scmp.eq.s32.totalorder %s23, 3
      %p109 = por %p107, %p108
      %p111 = scmp.ne.s32.totalorder %s96, %s110
      %p112 = scmp.eq.s32.totalorder %s23, 0
      %p113 = por %p111, %p112
      %s115 = sadd.s32 %s114, 1
      %p118 = scmp.eq.s32.totalorder %s17, 3
      %p119 = scmp.ne.s32.totalorder %s114, %s116
      %p120 = scmp.eq.s32.totalorder %s17, 0
      %p121 = por %p119, %p120
      %p122 = scmp.ne.s32.totalorder %s114, %s116
      %p123 = scmp.eq.s32.totalorder %s22, 3
      %p124 = por %p122, %p123
      %p125 = scmp.ne.s32.totalorder %s116, %s117
      %p126 = scmp.eq.s32.totalorder %s22, 0
      %p127 = por %p125, %p126
      %p128 = scmp.ne.s32.totalorder %s116, %s117
      %p129 = scmp.eq.s32.totalorder %s23, 3
      %p130 = por %p128, %p129
      %p132 = scmp.ne.s32.totalorder %s117, %s131
      %p133 = scmp.eq.s32.totalorder %s23, 0
      %p134 = por %p132, %p133
      %s135 = ssub.s32 %s17, %s24
      %p136 = scmp.eq.s32.totalorder %s135, 0
      %s138 = sadd.s32 %s137, 1
      %s139 = scalar_select %p136, %s137, %s138
      %p142 = pneg %p136
      %p143 = scmp.eq.s32.totalorder %s17, 3
      %p144 = por %p142, %p143
      %p145 = scmp.ne.s32.totalorder %s137, %s140
      %p146 = scmp.eq.s32.totalorder %s17, 0
      %p147 = por %p145, %p146
      %p148 = scmp.ne.s32.totalorder %s137, %s140
      %p149 = scmp.eq.s32.totalorder %s22, 3
      %p150 = por %p148, %p149
      %p151 = scmp.ne.s32.totalorder %s140, %s141
      %p152 = scmp.eq.s32.totalorder %s22, 0
      %p153 = por %p151, %p152
      %p154 = scmp.ne.s32.totalorder %s140, %s141
      %p155 = scmp.eq.s32.totalorder %s23, 3
      %p156 = por %p154, %p155
      %p158 = scmp.ne.s32.totalorder %s141, %s157
      %p159 = scmp.eq.s32.totalorder %s23, 0
      %p160 = por %p158, %p159
      %p161 = scmp.le.s32.totalorder 1, %s17
      %p162 = scmp.lt.s32.totalorder %s17, 5
      %p163 = pnand %p161, %p162
      %p164 = pneg %p163
      // Predicated region
      $region9: #{tpu_custom_call.1} parent=5 // pred_check
        _
      $region10: #{tpu_custom_call.1} parent=5 // pred_check_branch
        %166 = sbr.rel (%p163) target = $region12
      $region11: #{tpu_custom_call.1} parent=5 // pred_region
        %s167 = ssub.s32 %s17, 1
        // Predicated region
        $region13: #{tpu_custom_call.1} parent=11 // pred_check
          %p168 = pneg %p64
        $region14: #{tpu_custom_call.1} parent=11 // pred_check_branch
          %170 = sbr.rel (%p168) target = $region16
        $region15: #{tpu_custom_call.1} parent=11 // pred_region
          %s172 = ssub.s32 512, 512
          %173 = vsyncadd [#allocation3], %s172
          %s174 = sshll.u32 [#allocation2], 4
          %s175 = int_to_ptr.vmem [resolvable:$true] %s174
          %180 = dma.hbm_to_vmem [thread:$0]  %s1, 512, %s175, [#allocation3], 128, 128, 8
        $region16: #{tpu_custom_call.1} parent=11 // pred_fallthru
          _
        // Predicated region
        $region17: #{tpu_custom_call.1} parent=11 // pred_check
          %p181 = pneg %p85
        $region18: #{tpu_custom_call.1} parent=11 // pred_check_branch
          %183 = sbr.rel (%p181) target = $region20
        $region19: #{tpu_custom_call.1} parent=11 // pred_region
          %s185 = ssub.s32 16, 16
          %186 = vsyncadd [#allocation6], %s185
          %s188 = sshll.u32 [#allocation5], 4
          %s189 = int_to_ptr.vmem [resolvable:$true] %s188
          %191 = dma.hbm_to_vmem [thread:$0]  %s2, 16, %s189, [#allocation6]
        $region20: #{tpu_custom_call.1} parent=11 // pred_fallthru
          _
        // Predicated region
        $region21: #{tpu_custom_call.1} parent=11 // pred_check
          %p192 = pneg %p106
        $region22: #{tpu_custom_call.1} parent=11 // pred_check_branch
          %194 = sbr.rel (%p192) target = $region24
        $region23: #{tpu_custom_call.1} parent=11 // pred_region
          %s196 = ssub.s32 4096, 4096
          %197 = vsyncadd [#allocation6], %s196
          %s198 = sshll.u32 [#allocation7], 4
          %s199 = int_to_ptr.vmem [resolvable:$true] %s198
          %204 = dma.hbm_to_vmem [thread:$0]  %s3, 4096, %s199, [#allocation6], 512, 512, 32
        $region24: #{tpu_custom_call.1} parent=11 // pred_fallthru
          _
        // Predicated region
        $region25: #{tpu_custom_call.1} parent=11 // pred_check
          %p205 = pneg %p127
        $region26: #{tpu_custom_call.1} parent=11 // pred_check_branch
          %207 = sbr.rel (%p205) target = $region28
        $region27: #{tpu_custom_call.1} parent=11 // pred_region
          %s209 = ssub.s32 64, 64
          %210 = vsyncadd [#allocation9], %s209
          %s212 = sshll.u32 [#allocation8], 4
          %s213 = int_to_ptr.vmem [resolvable:$true] %s212
          %215 = dma.hbm_to_vmem [thread:$0]  %s4, 64, %s213, [#allocation9]
        $region28: #{tpu_custom_call.1} parent=11 // pred_fallthru
          _
      $region12: #{tpu_custom_call.1} parent=5 // pred_fallthru
        _
      %p216 = scmp.lt.s32.totalorder %s17, 4
      // Predicated region
      $region29: #{tpu_custom_call.1} parent=5 // pred_check
        %p217 = pneg %p216
      $region30: #{tpu_custom_call.1} parent=5 // pred_check_branch
        %219 = sbr.rel (%p217) target = $region32
      $region31: #{tpu_custom_call.1} parent=5 // pred_region
        // Predicated region
        $region33: #{tpu_custom_call.1} parent=31 // pred_check
          %p220 = pneg %p37
        $region34: #{tpu_custom_call.1} parent=31 // pred_check_branch
          %222 = sbr.rel (%p220) target = $region36
        $region35: #{tpu_custom_call.1} parent=31 // pred_region
          %s223 = smul.u32 32, %s17
          %p224 = scmp.lt.s32.totalorder %s223, 127
          %s225 = scalar_select %p224, %s223, 127
          %s226 = smul.addr %s225, 8
          %s227 = scalar_lea.vmem %s0, %s226
          %s228 = smul.u32 32, %s17
        $region36: #{tpu_custom_call.1} parent=31 // pred_fallthru
          _
      $region32: #{tpu_custom_call.1} parent=5 // pred_fallthru
        _
      %p229 = scmp.le.s32.totalorder 1, %s17
      %p230 = scmp.lt.s32.totalorder %s17, 5
      %p231 = pnand %p229, %p230
      %p232 = pneg %p231
      // Predicated region
      $region37: #{tpu_custom_call.1} parent=5 // pred_check
        _
      $region38: #{tpu_custom_call.1} parent=5 // pred_check_branch
        %234 = sbr.rel (%p231) target = $region40
      $region39: #{tpu_custom_call.1} parent=5 // pred_region
        %s235 = ssub.s32 %s17, 1
        // Predicated region
        $region41: #{tpu_custom_call.1} parent=39 // pred_check
          %p236 = pneg %p64
        $region42: #{tpu_custom_call.1} parent=39 // pred_check_branch
          %238 = sbr.rel (%p236) target = $region44
        $region43: #{tpu_custom_call.1} parent=39 // pred_region
          %239 = dma.done [#allocation3], 512
        $region44: #{tpu_custom_call.1} parent=39 // pred_fallthru
          _
        // Predicated region
        $region45: #{tpu_custom_call.1} parent=39 // pred_check
          %p240 = pneg %p85
        $region46: #{tpu_custom_call.1} parent=39 // pred_check_branch
          %242 = sbr.rel (%p240) target = $region48
        $region47: #{tpu_custom_call.1} parent=39 // pred_region
          %243 = dma.done [#allocation6], 16
        $region48: #{tpu_custom_call.1} parent=39 // pred_fallthru
          _
        // Predicated region
        $region49: #{tpu_custom_call.1} parent=39 // pred_check
          %p244 = pneg %p106
        $region50: #{tpu_custom_call.1} parent=39 // pred_check_branch
          %246 = sbr.rel (%p244) target = $region52
        $region51: #{tpu_custom_call.1} parent=39 // pred_region
          %247 = dma.done [#allocation6], 4096
        $region52: #{tpu_custom_call.1} parent=39 // pred_fallthru
          _
        // Predicated region
        $region53: #{tpu_custom_call.1} parent=39 // pred_check
          %p248 = pneg %p127
        $region54: #{tpu_custom_call.1} parent=39 // pred_check_branch
          %250 = sbr.rel (%p248) target = $region56
        $region55: #{tpu_custom_call.1} parent=39 // pred_region
          %251 = dma.done [#allocation9], 64
        $region56: #{tpu_custom_call.1} parent=39 // pred_fallthru
          _
        %s252 = smul.u32 32, %s22
        %p253 = scmp.lt.s32.totalorder %s252, 127
        %s254 = scalar_select %p253, %s252, 127
        %s255 = smul.addr %s254, 8
        %s256 = scalar_lea.vmem %s0, %s255
        %p257 = pneg %p43
        %p258 = pneg %p40
        %p259 = pneg %p64
        %p260 = pneg %p61
        %p261 = pneg %p85
        %p262 = pneg %p82
        %p263 = pneg %p106
        %p264 = pneg %p103
        %p265 = pneg %p127
        %p266 = pneg %p124
        %p267 = pneg %p153
        %p268 = pneg %p150
        %s269 = sand.u32 %s140, 1
        %s270 = scalar_lea.sflag [#allocation4], %s269
        %s271 = sand.u32 %s140, 1
        %s272 = smul.addr %s271, 1024
        %s273 = scalar_lea.vmem [#allocation10], %s272
        %s274 = smul.u32 32, %s22
        %p275 = scmp.lt.s32.totalorder %s274, 127
        %s276 = scalar_select %p275, %s274, 127
        %s277 = smul.addr %s276, 8
        %s278 = scalar_lea.vmem %s0, %s277
        %s279 = smul.u32 32, %s22
        %s280 = smul.u32 32, %s22
        %v281 = vld [vmem:[%s278] sm:$0xff]
        %v282 = vld [vmem:[%s278 + $0x8] sm:$0xff]
        %v283 = vld [vmem:[%s278 + $0x10] sm:$0xff]
        %v284 = vld [vmem:[%s278 + $0x18] sm:$0xff]
        %v285 = vld [vmem:[%s278 + $0x20] sm:$0xff]
        %v286 = vld [vmem:[%s278 + $0x28] sm:$0xff]
        %v287 = vld [vmem:[%s278 + $0x30] sm:$0xff]
        %v288 = vld [vmem:[%s278 + $0x38] sm:$0xff]
        %v289 = vld [vmem:[%s278 + $0x40] sm:$0xff]
        %v290 = vld [vmem:[%s278 + $0x48] sm:$0xff]
        %v291 = vld [vmem:[%s278 + $0x50] sm:$0xff]
        %v292 = vld [vmem:[%s278 + $0x58] sm:$0xff]
        %v293 = vld [vmem:[%s278 + $0x60] sm:$0xff]
        %v294 = vld [vmem:[%s278 + $0x68] sm:$0xff]
        %v295 = vld [vmem:[%s278 + $0x70] sm:$0xff]
        %v296 = vld [vmem:[%s278 + $0x78] sm:$0xff]
        %v297 = vld [vmem:[%s278 + $0x80] sm:$0xff]
        %v298 = vld [vmem:[%s278 + $0x88] sm:$0xff]
        %v299 = vld [vmem:[%s278 + $0x90] sm:$0xff]
        %v300 = vld [vmem:[%s278 + $0x98] sm:$0xff]
        %v301 = vld [vmem:[%s278 + $0xa0] sm:$0xff]
        %v302 = vld [vmem:[%s278 + $0xa8] sm:$0xff]
        %v303 = vld [vmem:[%s278 + $0xb0] sm:$0xff]
        %v304 = vld [vmem:[%s278 + $0xb8] sm:$0xff]
        %v305 = vld [vmem:[%s278 + $0xc0] sm:$0xff]
        %v306 = vld [vmem:[%s278 + $0xc8] sm:$0xff]
        %v307 = vld [vmem:[%s278 + $0xd0] sm:$0xff]
        %v308 = vld [vmem:[%s278 + $0xd8] sm:$0xff]
        %v309 = vld [vmem:[%s278 + $0xe0] sm:$0xff]
        %v310 = vld [vmem:[%s278 + $0xe8] sm:$0xff]
        %v311 = vld [vmem:[%s278 + $0xf0] sm:$0xff]
        %v312 = vld [vmem:[%s278 + $0xf8] sm:$0xff]
        %v313 = vld [vmem:[#allocation2] sm:$0xff]
        %v314 = vld [vmem:[#allocation2 + $0x8] sm:$0xff]
        %v315 = vld [vmem:[#allocation2 + $0x10] sm:$0xff]
        %v316 = vld [vmem:[#allocation2 + $0x18] sm:$0xff]
        %v317 = vld [vmem:[#allocation5] sm:$0x1]
        %v319 = vlaneseq
        %v320 = vshrl.u32 %v319, 7
        %v321 = vsub.s32 0, %v320
        %v322 = vrot.slane %v317, %v321
        %vm324 = vcmask 261120
        %v326 = vsel %vm324, %v281, 0
        %v329 = vsel %vm324, %v282, 0
        %v332 = vsel %vm324, %v283, 0
        %v335 = vsel %vm324, %v284, 0
        %v338 = vsel %vm324, %v285, 0
        %v341 = vsel %vm324, %v286, 0
        %v344 = vsel %vm324, %v287, 0
        %v347 = vsel %vm324, %v288, 0
        %v350 = vsel %vm324, %v289, 0
        %v353 = vsel %vm324, %v290, 0
        %v356 = vsel %vm324, %v291, 0
        %v359 = vsel %vm324, %v292, 0
        %v362 = vsel %vm324, %v293, 0
        %v365 = vsel %vm324, %v294, 0
        %v368 = vsel %vm324, %v295, 0
        %v371 = vsel %vm324, %v296, 0
        %v374 = vsel %vm324, %v297, 0
        %v377 = vsel %vm324, %v298, 0
        %v380 = vsel %vm324, %v299, 0
        %v383 = vsel %vm324, %v300, 0
        %v386 = vsel %vm324, %v301, 0
        %v389 = vsel %vm324, %v302, 0
        %v392 = vsel %vm324, %v303, 0
        %v395 = vsel %vm324, %v304, 0
        %v398 = vsel %vm324, %v305, 0
        %v401 = vsel %vm324, %v306, 0
        %v404 = vsel %vm324, %v307, 0
        %v407 = vsel %vm324, %v308, 0
        %v410 = vsel %vm324, %v309, 0
        %v413 = vsel %vm324, %v310, 0
        %v416 = vsel %vm324, %v311, 0
        %v419 = vsel %vm324, %v312, 0
        %421 = vmatprep.subr.mxu0 0.0
        %422 = vmatpush1.msra.mxu0 0.0
        %423 = vmatprep.subr.mxu0 0.0
        %424 = vmatpush1.msra.mxu0 0.0
        %425 = vmatprep.subr.mxu0 0.0
        %426 = vmatpush1.msra.mxu0 0.0
        %427 = vmatprep.subr.mxu0 0.0
        %428 = vmatpush1.msra.mxu0 0.0
        %429 = vmatprep.subr.mxu0 0.0
        %430 = vmatpush1.msra.mxu0 0.0
        %431 = vmatprep.subr.mxu0 0.0
        %432 = vmatpush1.msra.mxu0 0.0
        %433 = vmatprep.subr.mxu0 0.0
        %434 = vmatpush1.msra.mxu0 0.0
        %435 = vmatprep.subr.mxu0 0.0
        %436 = vmatpush1.msra.mxu0 0.0
        %437 = vmatprep.subr.mxu0 0.0
        %438 = vmatpush1.msra.mxu0 0.0
        %439 = vmatprep.subr.mxu0 0.0
        %440 = vmatpush1.msra.mxu0 0.0
        %441 = vmatprep.subr.mxu0 0.0
        %442 = vmatpush1.msra.mxu0 0.0
        %443 = vmatprep.subr.mxu0 0.0
        %444 = vmatpush1.msra.mxu0 0.0
        %445 = vmatprep.subr.mxu0 0.0
        %446 = vmatpush1.msra.mxu0 %v316
        %447 = vmatprep.subr.mxu0 0.0
        %448 = vmatpush1.msra.mxu0 %v315
        %449 = vmatprep.subr.mxu0 0.0
        %450 = vmatpush1.msra.mxu0 %v314
        %451 = vmatprep.subr.mxu0 0.0
        %452 = vmatpush1.msra.mxu0 %v313
        %453 = vmatprep.subr.mxu0 0.0
        %454 = vmatpush2.msra.mxu0 0.0
        %455 = vmatprep.subr.mxu0 0.0
        %456 = vmatpush2.msra.mxu0 0.0
        %457 = vmatprep.subr.mxu0 0.0
        %458 = vmatpush2.msra.mxu0 0.0
        %459 = vmatprep.subr.mxu0 0.0
        %460 = vmatpush2.msra.mxu0 0.0
        %461 = vmatprep.subr.mxu0 0.0
        %462 = vmatpush2.msra.mxu0 0.0
        %463 = vmatprep.subr.mxu0 0.0
        %464 = vmatpush2.msra.mxu0 0.0
        %465 = vmatprep.subr.mxu0 0.0
        %466 = vmatpush2.msra.mxu0 0.0
        %467 = vmatprep.subr.mxu0 0.0
        %468 = vmatpush2.msra.mxu0 0.0
        %469 = vmatprep.subr.mxu0 0.0
        %470 = vmatpush2.msra.mxu0 0.0
        %471 = vmatprep.subr.mxu0 0.0
        %472 = vmatpush2.msra.mxu0 0.0
        %473 = vmatprep.subr.mxu0 0.0
        %474 = vmatpush2.msra.mxu0 0.0
        %475 = vmatprep.subr.mxu0 0.0
        %476 = vmatpush2.msra.mxu0 0.0
        %477 = vmatprep.subr.mxu0 0.0
        %478 = vmatpush2.msra.mxu0 0.0
        %479 = vmatprep.subr.mxu0 0.0
        %480 = vmatpush2.msra.mxu0 0.0
        %481 = vmatprep.subr.mxu0 0.0
        %482 = vmatpush2.msra.mxu0 0.0
        %483 = vmatprep.subr.mxu0 0.0
        %484 = vmatpush2.msra.mxu0 0.0
        %485 = vmatprep.mubr.f32.mxu0 0.0
        %486 = vmatmul.mubr.f32.gmra.mxu0 %v326
        %v487 = vpop.f32.mrf.mxu0
        %v488 = vadd.f32 %v322, %v487
        %v489 = vpop.f32.mrf.mxu0
        %490 = vmatprep.mubr.f32.mxu0 0.0
        %491 = vmatmul.mubr.f32.gmra.mxu0 %v329
        %v492 = vpop.f32.mrf.mxu0
        %v493 = vadd.f32 %v322, %v492
        %v494 = vpop.f32.mrf.mxu0
        %495 = vmatprep.mubr.f32.mxu0 0.0
        %496 = vmatmul.mubr.f32.gmra.mxu0 %v332
        %v497 = vpop.f32.mrf.mxu0
        %v498 = vadd.f32 %v322, %v497
        %v499 = vpop.f32.mrf.mxu0
        %500 = vmatprep.mubr.f32.mxu0 0.0
        %501 = vmatmul.mubr.f32.gmra.mxu0 %v335
        %v502 = vpop.f32.mrf.mxu0
        %v503 = vadd.f32 %v322, %v502
        %v504 = vpop.f32.mrf.mxu0
        %505 = vmatprep.mubr.f32.mxu0 0.0
        %506 = vmatmul.mubr.f32.gmra.mxu0 %v338
        %v507 = vpop.f32.mrf.mxu0
        %v508 = vadd.f32 %v322, %v507
        %v509 = vpop.f32.mrf.mxu0
        %510 = vmatprep.mubr.f32.mxu0 0.0
        %511 = vmatmul.mubr.f32.gmra.mxu0 %v341
        %v512 = vpop.f32.mrf.mxu0
        %v513 = vadd.f32 %v322, %v512
        %v514 = vpop.f32.mrf.mxu0
        %515 = vmatprep.mubr.f32.mxu0 0.0
        %516 = vmatmul.mubr.f32.gmra.mxu0 %v344
        %v517 = vpop.f32.mrf.mxu0
        %v518 = vadd.f32 %v322, %v517
        %v519 = vpop.f32.mrf.mxu0
        %520 = vmatprep.mubr.f32.mxu0 0.0
        %521 = vmatmul.mubr.f32.gmra.mxu0 %v347
        %v522 = vpop.f32.mrf.mxu0
        %v523 = vadd.f32 %v322, %v522
        %v524 = vpop.f32.mrf.mxu0
        %525 = vmatprep.mubr.f32.mxu0 0.0
        %526 = vmatmul.mubr.f32.gmra.mxu0 %v350
        %v527 = vpop.f32.mrf.mxu0
        %v528 = vadd.f32 %v322, %v527
        %v529 = vpop.f32.mrf.mxu0
        %530 = vmatprep.mubr.f32.mxu0 0.0
        %531 = vmatmul.mubr.f32.gmra.mxu0 %v353
        %v532 = vpop.f32.mrf.mxu0
        %v533 = vadd.f32 %v322, %v532
        %v534 = vpop.f32.mrf.mxu0
        %535 = vmatprep.mubr.f32.mxu0 0.0
        %536 = vmatmul.mubr.f32.gmra.mxu0 %v356
        %v537 = vpop.f32.mrf.mxu0
        %v538 = vadd.f32 %v322, %v537
        %v539 = vpop.f32.mrf.mxu0
        %540 = vmatprep.mubr.f32.mxu0 0.0
        %541 = vmatmul.mubr.f32.gmra.mxu0 %v359
        %v542 = vpop.f32.mrf.mxu0
        %v543 = vadd.f32 %v322, %v542
        %v544 = vpop.f32.mrf.mxu0
        %545 = vmatprep.mubr.f32.mxu0 0.0
        %546 = vmatmul.mubr.f32.gmra.mxu0 %v362
        %v547 = vpop.f32.mrf.mxu0
        %v548 = vadd.f32 %v322, %v547
        %v549 = vpop.f32.mrf.mxu0
        %550 = vmatprep.mubr.f32.mxu0 0.0
        %551 = vmatmul.mubr.f32.gmra.mxu0 %v365
        %v552 = vpop.f32.mrf.mxu0
        %v553 = vadd.f32 %v322, %v552
        %v554 = vpop.f32.mrf.mxu0
        %555 = vmatprep.mubr.f32.mxu0 0.0
        %556 = vmatmul.mubr.f32.gmra.mxu0 %v368
        %v557 = vpop.f32.mrf.mxu0
        %v558 = vadd.f32 %v322, %v557
        %v559 = vpop.f32.mrf.mxu0
        %560 = vmatprep.mubr.f32.mxu0 0.0
        %561 = vmatmul.mubr.f32.gmra.mxu0 %v371
        %v562 = vpop.f32.mrf.mxu0
        %v563 = vadd.f32 %v322, %v562
        %v564 = vpop.f32.mrf.mxu0
        %565 = vmatprep.mubr.f32.mxu0 0.0
        %566 = vmatmul.mubr.f32.gmra.mxu0 %v374
        %v567 = vpop.f32.mrf.mxu0
        %v568 = vadd.f32 %v322, %v567
        %v569 = vpop.f32.mrf.mxu0
        %570 = vmatprep.mubr.f32.mxu0 0.0
        %571 = vmatmul.mubr.f32.gmra.mxu0 %v377
        %v572 = vpop.f32.mrf.mxu0
        %v573 = vadd.f32 %v322, %v572
        %v574 = vpop.f32.mrf.mxu0
        %575 = vmatprep.mubr.f32.mxu0 0.0
        %576 = vmatmul.mubr.f32.gmra.mxu0 %v380
        %v577 = vpop.f32.mrf.mxu0
        %v578 = vadd.f32 %v322, %v577
        %v579 = vpop.f32.mrf.mxu0
        %580 = vmatprep.mubr.f32.mxu0 0.0
        %581 = vmatmul.mubr.f32.gmra.mxu0 %v383
        %v582 = vpop.f32.mrf.mxu0
        %v583 = vadd.f32 %v322, %v582
        %v584 = vpop.f32.mrf.mxu0
        %585 = vmatprep.mubr.f32.mxu0 0.0
        %586 = vmatmul.mubr.f32.gmra.mxu0 %v386
        %v587 = vpop.f32.mrf.mxu0
        %v588 = vadd.f32 %v322, %v587
        %v589 = vpop.f32.mrf.mxu0
        %590 = vmatprep.mubr.f32.mxu0 0.0
        %591 = vmatmul.mubr.f32.gmra.mxu0 %v389
        %v592 = vpop.f32.mrf.mxu0
        %v593 = vadd.f32 %v322, %v592
        %v594 = vpop.f32.mrf.mxu0
        %595 = vmatprep.mubr.f32.mxu0 0.0
        %596 = vmatmul.mubr.f32.gmra.mxu0 %v392
        %v597 = vpop.f32.mrf.mxu0
        %v598 = vadd.f32 %v322, %v597
        %v599 = vpop.f32.mrf.mxu0
        %600 = vmatprep.mubr.f32.mxu0 0.0
        %601 = vmatmul.mubr.f32.gmra.mxu0 %v395
        %v602 = vpop.f32.mrf.mxu0
        %v603 = vadd.f32 %v322, %v602
        %v604 = vpop.f32.mrf.mxu0
        %605 = vmatprep.mubr.f32.mxu0 0.0
        %606 = vmatmul.mubr.f32.gmra.mxu0 %v398
        %v607 = vpop.f32.mrf.mxu0
        %v608 = vadd.f32 %v322, %v607
        %v609 = vpop.f32.mrf.mxu0
        %610 = vmatprep.mubr.f32.mxu0 0.0
        %611 = vmatmul.mubr.f32.gmra.mxu0 %v401
        %v612 = vpop.f32.mrf.mxu0
        %v613 = vadd.f32 %v322, %v612
        %v614 = vpop.f32.mrf.mxu0
        %615 = vmatprep.mubr.f32.mxu0 0.0
        %616 = vmatmul.mubr.f32.gmra.mxu0 %v404
        %v617 = vpop.f32.mrf.mxu0
        %v618 = vadd.f32 %v322, %v617
        %v619 = vpop.f32.mrf.mxu0
        %620 = vmatprep.mubr.f32.mxu0 0.0
        %621 = vmatmul.mubr.f32.gmra.mxu0 %v407
        %v622 = vpop.f32.mrf.mxu0
        %v623 = vadd.f32 %v322, %v622
        %v624 = vpop.f32.mrf.mxu0
        %625 = vmatprep.mubr.f32.mxu0 0.0
        %626 = vmatmul.mubr.f32.gmra.mxu0 %v410
        %v627 = vpop.f32.mrf.mxu0
        %v628 = vadd.f32 %v322, %v627
        %v629 = vpop.f32.mrf.mxu0
        %630 = vmatprep.mubr.f32.mxu0 0.0
        %631 = vmatmul.mubr.f32.gmra.mxu0 %v413
        %v632 = vpop.f32.mrf.mxu0
        %v633 = vadd.f32 %v322, %v632
        %v634 = vpop.f32.mrf.mxu0
        %635 = vmatprep.mubr.f32.mxu0 0.0
        %636 = vmatmul.mubr.f32.gmra.mxu0 %v416
        %v637 = vpop.f32.mrf.mxu0
        %v638 = vadd.f32 %v322, %v637
        %v639 = vpop.f32.mrf.mxu0
        %640 = vmatprep.mubr.f32.mxu0 0.0
        %641 = vmatmul.mubr.f32.gmra.mxu0 %v419
        %v642 = vpop.f32.mrf.mxu0
        %v643 = vadd.f32 %v322, %v642
        %v644 = vpop.f32.mrf.mxu0
        %645 = vdwg.mxu0
        %v646 = vmax.f32 %v488, 0.0
        %v647 = vmax.f32 %v493, 0.0
        %v648 = vmax.f32 %v498, 0.0
        %v649 = vmax.f32 %v503, 0.0
        %v650 = vmax.f32 %v508, 0.0
        %v651 = vmax.f32 %v513, 0.0
        %v652 = vmax.f32 %v518, 0.0
        %v653 = vmax.f32 %v523, 0.0
        %v654 = vmax.f32 %v528, 0.0
        %v655 = vmax.f32 %v533, 0.0
        %v656 = vmax.f32 %v538, 0.0
        %v657 = vmax.f32 %v543, 0.0
        %v658 = vmax.f32 %v548, 0.0
        %v659 = vmax.f32 %v553, 0.0
        %v660 = vmax.f32 %v558, 0.0
        %v661 = vmax.f32 %v563, 0.0
        %v662 = vmax.f32 %v568, 0.0
        %v663 = vmax.f32 %v573, 0.0
        %v664 = vmax.f32 %v578, 0.0
        %v665 = vmax.f32 %v583, 0.0
        %v666 = vmax.f32 %v588, 0.0
        %v667 = vmax.f32 %v593, 0.0
        %v668 = vmax.f32 %v598, 0.0
        %v669 = vmax.f32 %v603, 0.0
        %v670 = vmax.f32 %v608, 0.0
        %v671 = vmax.f32 %v613, 0.0
        %v672 = vmax.f32 %v618, 0.0
        %v673 = vmax.f32 %v623, 0.0
        %v674 = vmax.f32 %v628, 0.0
        %v675 = vmax.f32 %v633, 0.0
        %v676 = vmax.f32 %v638, 0.0
        %v677 = vmax.f32 %v643, 0.0
        %v678 = vld [vmem:[#allocation7] sm:$0xff]
        %v679 = vld [vmem:[#allocation7 + $0x8] sm:$0xff]
        %v680 = vld [vmem:[#allocation7 + $0x10] sm:$0xff]
        %v681 = vld [vmem:[#allocation7 + $0x18] sm:$0xff]
        %v682 = vld [vmem:[#allocation7 + $0x20] sm:$0xff]
        %v683 = vld [vmem:[#allocation7 + $0x28] sm:$0xff]
        %v684 = vld [vmem:[#allocation7 + $0x30] sm:$0xff]
        %v685 = vld [vmem:[#allocation7 + $0x38] sm:$0xff]
        %v686 = vld [vmem:[#allocation7 + $0x40] sm:$0xff]
        %v687 = vld [vmem:[#allocation7 + $0x48] sm:$0xff]
        %v688 = vld [vmem:[#allocation7 + $0x50] sm:$0xff]
        %v689 = vld [vmem:[#allocation7 + $0x58] sm:$0xff]
        %v690 = vld [vmem:[#allocation7 + $0x60] sm:$0xff]
        %v691 = vld [vmem:[#allocation7 + $0x68] sm:$0xff]
        %v692 = vld [vmem:[#allocation7 + $0x70] sm:$0xff]
        %v693 = vld [vmem:[#allocation7 + $0x78] sm:$0xff]
        %v694 = vld [vmem:[#allocation7 + $0x80] sm:$0xff]
        %v695 = vld [vmem:[#allocation7 + $0x88] sm:$0xff]
        %v696 = vld [vmem:[#allocation7 + $0x90] sm:$0xff]
        %v697 = vld [vmem:[#allocation7 + $0x98] sm:$0xff]
        %v698 = vld [vmem:[#allocation7 + $0xa0] sm:$0xff]
        %v699 = vld [vmem:[#allocation7 + $0xa8] sm:$0xff]
        %v700 = vld [vmem:[#allocation7 + $0xb0] sm:$0xff]
        %v701 = vld [vmem:[#allocation7 + $0xb8] sm:$0xff]
        %v702 = vld [vmem:[#allocation7 + $0xc0] sm:$0xff]
        %v703 = vld [vmem:[#allocation7 + $0xc8] sm:$0xff]
        %v704 = vld [vmem:[#allocation7 + $0xd0] sm:$0xff]
        %v705 = vld [vmem:[#allocation7 + $0xd8] sm:$0xff]
        %v706 = vld [vmem:[#allocation7 + $0xe0] sm:$0xff]
        %v707 = vld [vmem:[#allocation7 + $0xe8] sm:$0xff]
        %v708 = vld [vmem:[#allocation7 + $0xf0] sm:$0xff]
        %v709 = vld [vmem:[#allocation7 + $0xf8] sm:$0xff]
        %v710 = vld [vmem:[#allocation8] sm:$0xf]
        %v712 = vlaneseq
        %v713 = vshrl.u32 %v712, 7
        %v714 = vsub.s32 0, %v713
        %v715 = vrot.slane %v710, %v714
        %v716 = vlaneseq
        %v717 = vshrl.u32 %v716, 7
        %v718 = vsub.s32 1, %v717
        %v719 = vrot.slane %v710, %v718
        %v720 = vlaneseq
        %v721 = vshrl.u32 %v720, 7
        %v722 = vsub.s32 2, %v721
        %v723 = vrot.slane %v710, %v722
        %v724 = vlaneseq
        %v725 = vshrl.u32 %v724, 7
        %v726 = vsub.s32 3, %v725
        %v727 = vrot.slane %v710, %v726
        %vm732 = vcmask 523264
        %v734 = vsel %vm732, %v646, 0
        %v737 = vsel %vm732, %v647, 0
        %v740 = vsel %vm732, %v648, 0
        %v743 = vsel %vm732, %v649, 0
        %v746 = vsel %vm732, %v650, 0
        %v749 = vsel %vm732, %v651, 0
        %v752 = vsel %vm732, %v652, 0
        %v755 = vsel %vm732, %v653, 0
        %v758 = vsel %vm732, %v654, 0
        %v761 = vsel %vm732, %v655, 0
        %v764 = vsel %vm732, %v656, 0
        %v767 = vsel %vm732, %v657, 0
        %v770 = vsel %vm732, %v658, 0
        %v773 = vsel %vm732, %v659, 0
        %v776 = vsel %vm732, %v660, 0
        %v779 = vsel %vm732, %v661, 0
        %v782 = vsel %vm732, %v662, 0
        %v785 = vsel %vm732, %v663, 0
        %v788 = vsel %vm732, %v664, 0
        %v791 = vsel %vm732, %v665, 0
        %v794 = vsel %vm732, %v666, 0
        %v797 = vsel %vm732, %v667, 0
        %v800 = vsel %vm732, %v668, 0
        %v803 = vsel %vm732, %v669, 0
        %v806 = vsel %vm732, %v670, 0
        %v809 = vsel %vm732, %v671, 0
        %v812 = vsel %vm732, %v672, 0
        %v815 = vsel %vm732, %v673, 0
        %v818 = vsel %vm732, %v674, 0
        %v821 = vsel %vm732, %v675, 0
        %v824 = vsel %vm732, %v676, 0
        %v827 = vsel %vm732, %v677, 0
        %829 = vmatprep.subr.mxu0 0.0
        %830 = vmatpush1.msra.mxu0 0.0
        %831 = vmatprep.subr.mxu0 0.0
        %832 = vmatpush1.msra.mxu0 0.0
        %833 = vmatprep.subr.mxu0 0.0
        %834 = vmatpush1.msra.mxu0 0.0
        %835 = vmatprep.subr.mxu0 0.0
        %836 = vmatpush1.msra.mxu0 0.0
        %837 = vmatprep.subr.mxu0 0.0
        %838 = vmatpush1.msra.mxu0 0.0
        %839 = vmatprep.subr.mxu0 0.0
        %840 = vmatpush1.msra.mxu0 0.0
        %841 = vmatprep.subr.mxu0 0.0
        %842 = vmatpush1.msra.mxu0 0.0
        %843 = vmatprep.subr.mxu0 0.0
        %844 = vmatpush1.msra.mxu0 0.0
        %845 = vmatprep.subr.mxu0 %v707
        %846 = vmatpush1.msra.mxu0 %v706
        %847 = vmatprep.subr.mxu0 %v703
        %848 = vmatpush1.msra.mxu0 %v702
        %849 = vmatprep.subr.mxu0 %v699
        %850 = vmatpush1.msra.mxu0 %v698
        %851 = vmatprep.subr.mxu0 %v695
        %852 = vmatpush1.msra.mxu0 %v694
        %853 = vmatprep.subr.mxu0 %v691
        %854 = vmatpush1.msra.mxu0 %v690
        %855 = vmatprep.subr.mxu0 %v687
        %856 = vmatpush1.msra.mxu0 %v686
        %857 = vmatprep.subr.mxu0 %v683
        %858 = vmatpush1.msra.mxu0 %v682
        %859 = vmatprep.subr.mxu0 %v679
        %860 = vmatpush1.msra.mxu0 %v678
        %861 = vmatprep.subr.mxu0 0.0
        %862 = vmatpush2.msra.mxu0 0.0
        %863 = vmatprep.subr.mxu0 0.0
        %864 = vmatpush2.msra.mxu0 0.0
        %865 = vmatprep.subr.mxu0 0.0
        %866 = vmatpush2.msra.mxu0 0.0
        %867 = vmatprep.subr.mxu0 0.0
        %868 = vmatpush2.msra.mxu0 0.0
        %869 = vmatprep.subr.mxu0 0.0
        %870 = vmatpush2.msra.mxu0 0.0
        %871 = vmatprep.subr.mxu0 0.0
        %872 = vmatpush2.msra.mxu0 0.0
        %873 = vmatprep.subr.mxu0 0.0
        %874 = vmatpush2.msra.mxu0 0.0
        %875 = vmatprep.subr.mxu0 0.0
        %876 = vmatpush2.msra.mxu0 0.0
        %877 = vmatprep.subr.mxu0 0.0
        %878 = vmatpush2.msra.mxu0 0.0
        %879 = vmatprep.subr.mxu0 0.0
        %880 = vmatpush2.msra.mxu0 0.0
        %881 = vmatprep.subr.mxu0 0.0
        %882 = vmatpush2.msra.mxu0 0.0
        %883 = vmatprep.subr.mxu0 0.0
        %884 = vmatpush2.msra.mxu0 0.0
        %885 = vmatprep.subr.mxu0 0.0
        %886 = vmatpush2.msra.mxu0 0.0
        %887 = vmatprep.subr.mxu0 0.0
        %888 = vmatpush2.msra.mxu0 0.0
        %889 = vmatprep.subr.mxu0 0.0
        %890 = vmatpush2.msra.mxu0 0.0
        %891 = vmatprep.subr.mxu0 0.0
        %892 = vmatpush2.msra.mxu0 0.0
        %893 = vmatprep.mubr.f32.mxu0 0.0
        %894 = vmatmul.mubr.f32.gmra.mxu0 %v734
        %v895 = vpop.f32.mrf.mxu0
        %v896 = vadd.f32 %v715, %v895
        %v897 = vpop.f32.mrf.mxu0
        %v898 = vadd.f32 %v719, %v897
        %899 = vmatprep.mubr.f32.mxu0 0.0
        %900 = vmatmul.mubr.f32.gmra.mxu0 %v737
        %v901 = vpop.f32.mrf.mxu0
        %v902 = vadd.f32 %v715, %v901
        %v903 = vpop.f32.mrf.mxu0
        %v904 = vadd.f32 %v719, %v903
        %905 = vmatprep.mubr.f32.mxu0 0.0
        %906 = vmatmul.mubr.f32.gmra.mxu0 %v740
        %v907 = vpop.f32.mrf.mxu0
        %v908 = vadd.f32 %v715, %v907
        %v909 = vpop.f32.mrf.mxu0
        %v910 = vadd.f32 %v719, %v909
        %911 = vmatprep.mubr.f32.mxu0 0.0
        %912 = vmatmul.mubr.f32.gmra.mxu0 %v743
        %v913 = vpop.f32.mrf.mxu0
        %v914 = vadd.f32 %v715, %v913
        %v915 = vpop.f32.mrf.mxu0
        %v916 = vadd.f32 %v719, %v915
        %917 = vmatprep.mubr.f32.mxu0 0.0
        %918 = vmatmul.mubr.f32.gmra.mxu0 %v746
        %v919 = vpop.f32.mrf.mxu0
        %v920 = vadd.f32 %v715, %v919
        %v921 = vpop.f32.mrf.mxu0
        %v922 = vadd.f32 %v719, %v921
        %923 = vmatprep.mubr.f32.mxu0 0.0
        %924 = vmatmul.mubr.f32.gmra.mxu0 %v749
        %v925 = vpop.f32.mrf.mxu0
        %v926 = vadd.f32 %v715, %v925
        %v927 = vpop.f32.mrf.mxu0
        %v928 = vadd.f32 %v719, %v927
        %929 = vmatprep.mubr.f32.mxu0 0.0
        %930 = vmatmul.mubr.f32.gmra.mxu0 %v752
        %v931 = vpop.f32.mrf.mxu0
        %v932 = vadd.f32 %v715, %v931
        %v933 = vpop.f32.mrf.mxu0
        %v934 = vadd.f32 %v719, %v933
        %935 = vmatprep.mubr.f32.mxu0 0.0
        %936 = vmatmul.mubr.f32.gmra.mxu0 %v755
        %v937 = vpop.f32.mrf.mxu0
        %v938 = vadd.f32 %v715, %v937
        %v939 = vpop.f32.mrf.mxu0
        %v940 = vadd.f32 %v719, %v939
        %941 = vmatprep.mubr.f32.mxu0 0.0
        %942 = vmatmul.mubr.f32.gmra.mxu0 %v758
        %v943 = vpop.f32.mrf.mxu0
        %v944 = vadd.f32 %v715, %v943
        %v945 = vpop.f32.mrf.mxu0
        %v946 = vadd.f32 %v719, %v945
        %947 = vmatprep.mubr.f32.mxu0 0.0
        %948 = vmatmul.mubr.f32.gmra.mxu0 %v761
        %v949 = vpop.f32.mrf.mxu0
        %v950 = vadd.f32 %v715, %v949
        %v951 = vpop.f32.mrf.mxu0
        %v952 = vadd.f32 %v719, %v951
        %953 = vmatprep.mubr.f32.mxu0 0.0
        %954 = vmatmul.mubr.f32.gmra.mxu0 %v764
        %v955 = vpop.f32.mrf.mxu0
        %v956 = vadd.f32 %v715, %v955
        %v957 = vpop.f32.mrf.mxu0
        %v958 = vadd.f32 %v719, %v957
        %959 = vmatprep.mubr.f32.mxu0 0.0
        %960 = vmatmul.mubr.f32.gmra.mxu0 %v767
        %v961 = vpop.f32.mrf.mxu0
        %v962 = vadd.f32 %v715, %v961
        %v963 = vpop.f32.mrf.mxu0
        %v964 = vadd.f32 %v719, %v963
        %965 = vmatprep.mubr.f32.mxu0 0.0
        %966 = vmatmul.mubr.f32.gmra.mxu0 %v770
        %v967 = vpop.f32.mrf.mxu0
        %v968 = vadd.f32 %v715, %v967
        %v969 = vpop.f32.mrf.mxu0
        %v970 = vadd.f32 %v719, %v969
        %971 = vmatprep.mubr.f32.mxu0 0.0
        %972 = vmatmul.mubr.f32.gmra.mxu0 %v773
        %v973 = vpop.f32.mrf.mxu0
        %v974 = vadd.f32 %v715, %v973
        %v975 = vpop.f32.mrf.mxu0
        %v976 = vadd.f32 %v719, %v975
        %977 = vmatprep.mubr.f32.mxu0 0.0
        %978 = vmatmul.mubr.f32.gmra.mxu0 %v776
        %v979 = vpop.f32.mrf.mxu0
        %v980 = vadd.f32 %v715, %v979
        %v981 = vpop.f32.mrf.mxu0
        %v982 = vadd.f32 %v719, %v981
        %983 = vmatprep.mubr.f32.mxu0 0.0
        %984 = vmatmul.mubr.f32.gmra.mxu0 %v779
        %v985 = vpop.f32.mrf.mxu0
        %v986 = vadd.f32 %v715, %v985
        %v987 = vpop.f32.mrf.mxu0
        %v988 = vadd.f32 %v719, %v987
        %989 = vmatprep.mubr.f32.mxu0 0.0
        %990 = vmatmul.mubr.f32.gmra.mxu0 %v782
        %v991 = vpop.f32.mrf.mxu0
        %v992 = vadd.f32 %v715, %v991
        %v993 = vpop.f32.mrf.mxu0
        %v994 = vadd.f32 %v719, %v993
        %995 = vmatprep.mubr.f32.mxu0 0.0
        %996 = vmatmul.mubr.f32.gmra.mxu0 %v785
        %v997 = vpop.f32.mrf.mxu0
        %v998 = vadd.f32 %v715, %v997
        %v999 = vpop.f32.mrf.mxu0
        %v1000 = vadd.f32 %v719, %v999
        %1001 = vmatprep.mubr.f32.mxu0 0.0
        %1002 = vmatmul.mubr.f32.gmra.mxu0 %v788
        %v1003 = vpop.f32.mrf.mxu0
        %v1004 = vadd.f32 %v715, %v1003
        %v1005 = vpop.f32.mrf.mxu0
        %v1006 = vadd.f32 %v719, %v1005
        %1007 = vmatprep.mubr.f32.mxu0 0.0
        %1008 = vmatmul.mubr.f32.gmra.mxu0 %v791
        %v1009 = vpop.f32.mrf.mxu0
        %v1010 = vadd.f32 %v715, %v1009
        %v1011 = vpop.f32.mrf.mxu0
        %v1012 = vadd.f32 %v719, %v1011
        %1013 = vmatprep.mubr.f32.mxu0 0.0
        %1014 = vmatmul.mubr.f32.gmra.mxu0 %v794
        %v1015 = vpop.f32.mrf.mxu0
        %v1016 = vadd.f32 %v715, %v1015
        %v1017 = vpop.f32.mrf.mxu0
        %v1018 = vadd.f32 %v719, %v1017
        %1019 = vmatprep.mubr.f32.mxu0 0.0
        %1020 = vmatmul.mubr.f32.gmra.mxu0 %v797
        %v1021 = vpop.f32.mrf.mxu0
        %v1022 = vadd.f32 %v715, %v1021
        %v1023 = vpop.f32.mrf.mxu0
        %v1024 = vadd.f32 %v719, %v1023
        %1025 = vmatprep.mubr.f32.mxu0 0.0
        %1026 = vmatmul.mubr.f32.gmra.mxu0 %v800
        %v1027 = vpop.f32.mrf.mxu0
        %v1028 = vadd.f32 %v715, %v1027
        %v1029 = vpop.f32.mrf.mxu0
        %v1030 = vadd.f32 %v719, %v1029
        %1031 = vmatprep.mubr.f32.mxu0 0.0
        %1032 = vmatmul.mubr.f32.gmra.mxu0 %v803
        %v1033 = vpop.f32.mrf.mxu0
        %v1034 = vadd.f32 %v715, %v1033
        %v1035 = vpop.f32.mrf.mxu0
        %v1036 = vadd.f32 %v719, %v1035
        %1037 = vmatprep.mubr.f32.mxu0 0.0
        %1038 = vmatmul.mubr.f32.gmra.mxu0 %v806
        %v1039 = vpop.f32.mrf.mxu0
        %v1040 = vadd.f32 %v715, %v1039
        %v1041 = vpop.f32.mrf.mxu0
        %v1042 = vadd.f32 %v719, %v1041
        %1043 = vmatprep.mubr.f32.mxu0 0.0
        %1044 = vmatmul.mubr.f32.gmra.mxu0 %v809
        %v1045 = vpop.f32.mrf.mxu0
        %v1046 = vadd.f32 %v715, %v1045
        %v1047 = vpop.f32.mrf.mxu0
        %v1048 = vadd.f32 %v719, %v1047
        %1049 = vmatprep.mubr.f32.mxu0 0.0
        %1050 = vmatmul.mubr.f32.gmra.mxu0 %v812
        %v1051 = vpop.f32.mrf.mxu0
        %v1052 = vadd.f32 %v715, %v1051
        %v1053 = vpop.f32.mrf.mxu0
        %v1054 = vadd.f32 %v719, %v1053
        %1055 = vmatprep.mubr.f32.mxu0 0.0
        %1056 = vmatmul.mubr.f32.gmra.mxu0 %v815
        %v1057 = vpop.f32.mrf.mxu0
        %v1058 = vadd.f32 %v715, %v1057
        %v1059 = vpop.f32.mrf.mxu0
        %v1060 = vadd.f32 %v719, %v1059
        %1061 = vmatprep.mubr.f32.mxu0 0.0
        %1062 = vmatmul.mubr.f32.gmra.mxu0 %v818
        %v1063 = vpop.f32.mrf.mxu0
        %v1064 = vadd.f32 %v715, %v1063
        %v1065 = vpop.f32.mrf.mxu0
        %v1066 = vadd.f32 %v719, %v1065
        %1067 = vmatprep.mubr.f32.mxu0 0.0
        %1068 = vmatmul.mubr.f32.gmra.mxu0 %v821
        %v1069 = vpop.f32.mrf.mxu0
        %v1070 = vadd.f32 %v715, %v1069
        %v1071 = vpop.f32.mrf.mxu0
        %v1072 = vadd.f32 %v719, %v1071
        %1073 = vmatprep.mubr.f32.mxu0 0.0
        %1074 = vmatmul.mubr.f32.gmra.mxu0 %v824
        %v1075 = vpop.f32.mrf.mxu0
        %v1076 = vadd.f32 %v715, %v1075
        %v1077 = vpop.f32.mrf.mxu0
        %v1078 = vadd.f32 %v719, %v1077
        %1079 = vmatprep.mubr.f32.mxu0 0.0
        %1080 = vmatmul.mubr.f32.gmra.mxu0 %v827
        %v1081 = vpop.f32.mrf.mxu0
        %v1082 = vadd.f32 %v715, %v1081
        %v1083 = vpop.f32.mrf.mxu0
        %v1084 = vadd.f32 %v719, %v1083
        %1085 = vdwg.mxu0
        %1086 = vmatprep.subr.mxu0 0.0
        %1087 = vmatpush1.msra.mxu0 0.0
        %1088 = vmatprep.subr.mxu0 0.0
        %1089 = vmatpush1.msra.mxu0 0.0
        %1090 = vmatprep.subr.mxu0 0.0
        %1091 = vmatpush1.msra.mxu0 0.0
        %1092 = vmatprep.subr.mxu0 0.0
        %1093 = vmatpush1.msra.mxu0 0.0
        %1094 = vmatprep.subr.mxu0 0.0
        %1095 = vmatpush1.msra.mxu0 0.0
        %1096 = vmatprep.subr.mxu0 0.0
        %1097 = vmatpush1.msra.mxu0 0.0
        %1098 = vmatprep.subr.mxu0 0.0
        %1099 = vmatpush1.msra.mxu0 0.0
        %1100 = vmatprep.subr.mxu0 0.0
        %1101 = vmatpush1.msra.mxu0 0.0
        %1102 = vmatprep.subr.mxu0 %v709
        %1103 = vmatpush1.msra.mxu0 %v708
        %1104 = vmatprep.subr.mxu0 %v705
        %1105 = vmatpush1.msra.mxu0 %v704
        %1106 = vmatprep.subr.mxu0 %v701
        %1107 = vmatpush1.msra.mxu0 %v700
        %1108 = vmatprep.subr.mxu0 %v697
        %1109 = vmatpush1.msra.mxu0 %v696
        %1110 = vmatprep.subr.mxu0 %v693
        %1111 = vmatpush1.msra.mxu0 %v692
        %1112 = vmatprep.subr.mxu0 %v689
        %1113 = vmatpush1.msra.mxu0 %v688
        %1114 = vmatprep.subr.mxu0 %v685
        %1115 = vmatpush1.msra.mxu0 %v684
        %1116 = vmatprep.subr.mxu0 %v681
        %1117 = vmatpush1.msra.mxu0 %v680
        %1118 = vmatprep.subr.mxu0 0.0
        %1119 = vmatpush2.msra.mxu0 0.0
        %1120 = vmatprep.subr.mxu0 0.0
        %1121 = vmatpush2.msra.mxu0 0.0
        %1122 = vmatprep.subr.mxu0 0.0
        %1123 = vmatpush2.msra.mxu0 0.0
        %1124 = vmatprep.subr.mxu0 0.0
        %1125 = vmatpush2.msra.mxu0 0.0
        %1126 = vmatprep.subr.mxu0 0.0
        %1127 = vmatpush2.msra.mxu0 0.0
        %1128 = vmatprep.subr.mxu0 0.0
        %1129 = vmatpush2.msra.mxu0 0.0
        %1130 = vmatprep.subr.mxu0 0.0
        %1131 = vmatpush2.msra.mxu0 0.0
        %1132 = vmatprep.subr.mxu0 0.0
        %1133 = vmatpush2.msra.mxu0 0.0
        %1134 = vmatprep.subr.mxu0 0.0
        %1135 = vmatpush2.msra.mxu0 0.0
        %1136 = vmatprep.subr.mxu0 0.0
        %1137 = vmatpush2.msra.mxu0 0.0
        %1138 = vmatprep.subr.mxu0 0.0
        %1139 = vmatpush2.msra.mxu0 0.0
        %1140 = vmatprep.subr.mxu0 0.0
        %1141 = vmatpush2.msra.mxu0 0.0
        %1142 = vmatprep.subr.mxu0 0.0
        %1143 = vmatpush2.msra.mxu0 0.0
        %1144 = vmatprep.subr.mxu0 0.0
        %1145 = vmatpush2.msra.mxu0 0.0
        %1146 = vmatprep.subr.mxu0 0.0
        %1147 = vmatpush2.msra.mxu0 0.0
        %1148 = vmatprep.subr.mxu0 0.0
        %1149 = vmatpush2.msra.mxu0 0.0
        %1150 = vmatprep.mubr.f32.mxu0 0.0
        %1151 = vmatmul.mubr.f32.gmra.mxu0 %v734
        %v1152 = vpop.f32.mrf.mxu0
        %v1153 = vadd.f32 %v723, %v1152
        %v1154 = vpop.f32.mrf.mxu0
        %v1155 = vadd.f32 %v727, %v1154
        %1156 = vmatprep.mubr.f32.mxu0 0.0
        %1157 = vmatmul.mubr.f32.gmra.mxu0 %v737
        %v1158 = vpop.f32.mrf.mxu0
        %v1159 = vadd.f32 %v723, %v1158
        %v1160 = vpop.f32.mrf.mxu0
        %v1161 = vadd.f32 %v727, %v1160
        %1162 = vmatprep.mubr.f32.mxu0 0.0
        %1163 = vmatmul.mubr.f32.gmra.mxu0 %v740
        %v1164 = vpop.f32.mrf.mxu0
        %v1165 = vadd.f32 %v723, %v1164
        %v1166 = vpop.f32.mrf.mxu0
        %v1167 = vadd.f32 %v727, %v1166
        %1168 = vmatprep.mubr.f32.mxu0 0.0
        %1169 = vmatmul.mubr.f32.gmra.mxu0 %v743
        %v1170 = vpop.f32.mrf.mxu0
        %v1171 = vadd.f32 %v723, %v1170
        %v1172 = vpop.f32.mrf.mxu0
        %v1173 = vadd.f32 %v727, %v1172
        %1174 = vmatprep.mubr.f32.mxu0 0.0
        %1175 = vmatmul.mubr.f32.gmra.mxu0 %v746
        %v1176 = vpop.f32.mrf.mxu0
        %v1177 = vadd.f32 %v723, %v1176
        %v1178 = vpop.f32.mrf.mxu0
        %v1179 = vadd.f32 %v727, %v1178
        %1180 = vmatprep.mubr.f32.mxu0 0.0
        %1181 = vmatmul.mubr.f32.gmra.mxu0 %v749
        %v1182 = vpop.f32.mrf.mxu0
        %v1183 = vadd.f32 %v723, %v1182
        %v1184 = vpop.f32.mrf.mxu0
        %v1185 = vadd.f32 %v727, %v1184
        %1186 = vmatprep.mubr.f32.mxu0 0.0
        %1187 = vmatmul.mubr.f32.gmra.mxu0 %v752
        %v1188 = vpop.f32.mrf.mxu0
        %v1189 = vadd.f32 %v723, %v1188
        %v1190 = vpop.f32.mrf.mxu0
        %v1191 = vadd.f32 %v727, %v1190
        %1192 = vmatprep.mubr.f32.mxu0 0.0
        %1193 = vmatmul.mubr.f32.gmra.mxu0 %v755
        %v1194 = vpop.f32.mrf.mxu0
        %v1195 = vadd.f32 %v723, %v1194
        %v1196 = vpop.f32.mrf.mxu0
        %v1197 = vadd.f32 %v727, %v1196
        %1198 = vmatprep.mubr.f32.mxu0 0.0
        %1199 = vmatmul.mubr.f32.gmra.mxu0 %v758
        %v1200 = vpop.f32.mrf.mxu0
        %v1201 = vadd.f32 %v723, %v1200
        %v1202 = vpop.f32.mrf.mxu0
        %v1203 = vadd.f32 %v727, %v1202
        %1204 = vmatprep.mubr.f32.mxu0 0.0
        %1205 = vmatmul.mubr.f32.gmra.mxu0 %v761
        %v1206 = vpop.f32.mrf.mxu0
        %v1207 = vadd.f32 %v723, %v1206
        %v1208 = vpop.f32.mrf.mxu0
        %v1209 = vadd.f32 %v727, %v1208
        %1210 = vmatprep.mubr.f32.mxu0 0.0
        %1211 = vmatmul.mubr.f32.gmra.mxu0 %v764
        %v1212 = vpop.f32.mrf.mxu0
        %v1213 = vadd.f32 %v723, %v1212
        %v1214 = vpop.f32.mrf.mxu0
        %v1215 = vadd.f32 %v727, %v1214
        %1216 = vmatprep.mubr.f32.mxu0 0.0
        %1217 = vmatmul.mubr.f32.gmra.mxu0 %v767
        %v1218 = vpop.f32.mrf.mxu0
        %v1219 = vadd.f32 %v723, %v1218
        %v1220 = vpop.f32.mrf.mxu0
        %v1221 = vadd.f32 %v727, %v1220
        %1222 = vmatprep.mubr.f32.mxu0 0.0
        %1223 = vmatmul.mubr.f32.gmra.mxu0 %v770
        %v1224 = vpop.f32.mrf.mxu0
        %v1225 = vadd.f32 %v723, %v1224
        %v1226 = vpop.f32.mrf.mxu0
        %v1227 = vadd.f32 %v727, %v1226
        %1228 = vmatprep.mubr.f32.mxu0 0.0
        %1229 = vmatmul.mubr.f32.gmra.mxu0 %v773
        %v1230 = vpop.f32.mrf.mxu0
        %v1231 = vadd.f32 %v723, %v1230
        %v1232 = vpop.f32.mrf.mxu0
        %v1233 = vadd.f32 %v727, %v1232
        %1234 = vmatprep.mubr.f32.mxu0 0.0
        %1235 = vmatmul.mubr.f32.gmra.mxu0 %v776
        %v1236 = vpop.f32.mrf.mxu0
        %v1237 = vadd.f32 %v723, %v1236
        %v1238 = vpop.f32.mrf.mxu0
        %v1239 = vadd.f32 %v727, %v1238
        %1240 = vmatprep.mubr.f32.mxu0 0.0
        %1241 = vmatmul.mubr.f32.gmra.mxu0 %v779
        %v1242 = vpop.f32.mrf.mxu0
        %v1243 = vadd.f32 %v723, %v1242
        %v1244 = vpop.f32.mrf.mxu0
        %v1245 = vadd.f32 %v727, %v1244
        %1246 = vmatprep.mubr.f32.mxu0 0.0
        %1247 = vmatmul.mubr.f32.gmra.mxu0 %v782
        %v1248 = vpop.f32.mrf.mxu0
        %v1249 = vadd.f32 %v723, %v1248
        %v1250 = vpop.f32.mrf.mxu0
        %v1251 = vadd.f32 %v727, %v1250
        %1252 = vmatprep.mubr.f32.mxu0 0.0
        %1253 = vmatmul.mubr.f32.gmra.mxu0 %v785
        %v1254 = vpop.f32.mrf.mxu0
        %v1255 = vadd.f32 %v723, %v1254
        %v1256 = vpop.f32.mrf.mxu0
        %v1257 = vadd.f32 %v727, %v1256
        %1258 = vmatprep.mubr.f32.mxu0 0.0
        %1259 = vmatmul.mubr.f32.gmra.mxu0 %v788
        %v1260 = vpop.f32.mrf.mxu0
        %v1261 = vadd.f32 %v723, %v1260
        %v1262 = vpop.f32.mrf.mxu0
        %v1263 = vadd.f32 %v727, %v1262
        %1264 = vmatprep.mubr.f32.mxu0 0.0
        %1265 = vmatmul.mubr.f32.gmra.mxu0 %v791
        %v1266 = vpop.f32.mrf.mxu0
        %v1267 = vadd.f32 %v723, %v1266
        %v1268 = vpop.f32.mrf.mxu0
        %v1269 = vadd.f32 %v727, %v1268
        %1270 = vmatprep.mubr.f32.mxu0 0.0
        %1271 = vmatmul.mubr.f32.gmra.mxu0 %v794
        %v1272 = vpop.f32.mrf.mxu0
        %v1273 = vadd.f32 %v723, %v1272
        %v1274 = vpop.f32.mrf.mxu0
        %v1275 = vadd.f32 %v727, %v1274
        %1276 = vmatprep.mubr.f32.mxu0 0.0
        %1277 = vmatmul.mubr.f32.gmra.mxu0 %v797
        %v1278 = vpop.f32.mrf.mxu0
        %v1279 = vadd.f32 %v723, %v1278
        %v1280 = vpop.f32.mrf.mxu0
        %v1281 = vadd.f32 %v727, %v1280
        %1282 = vmatprep.mubr.f32.mxu0 0.0
        %1283 = vmatmul.mubr.f32.gmra.mxu0 %v800
        %v1284 = vpop.f32.mrf.mxu0
        %v1285 = vadd.f32 %v723, %v1284
        %v1286 = vpop.f32.mrf.mxu0
        %v1287 = vadd.f32 %v727, %v1286
        %1288 = vmatprep.mubr.f32.mxu0 0.0
        %1289 = vmatmul.mubr.f32.gmra.mxu0 %v803
        %v1290 = vpop.f32.mrf.mxu0
        %v1291 = vadd.f32 %v723, %v1290
        %v1292 = vpop.f32.mrf.mxu0
        %v1293 = vadd.f32 %v727, %v1292
        %1294 = vmatprep.mubr.f32.mxu0 0.0
        %1295 = vmatmul.mubr.f32.gmra.mxu0 %v806
        %v1296 = vpop.f32.mrf.mxu0
        %v1297 = vadd.f32 %v723, %v1296
        %v1298 = vpop.f32.mrf.mxu0
        %v1299 = vadd.f32 %v727, %v1298
        %1300 = vmatprep.mubr.f32.mxu0 0.0
        %1301 = vmatmul.mubr.f32.gmra.mxu0 %v809
        %v1302 = vpop.f32.mrf.mxu0
        %v1303 = vadd.f32 %v723, %v1302
        %v1304 = vpop.f32.mrf.mxu0
        %v1305 = vadd.f32 %v727, %v1304
        %1306 = vmatprep.mubr.f32.mxu0 0.0
        %1307 = vmatmul.mubr.f32.gmra.mxu0 %v812
        %v1308 = vpop.f32.mrf.mxu0
        %v1309 = vadd.f32 %v723, %v1308
        %v1310 = vpop.f32.mrf.mxu0
        %v1311 = vadd.f32 %v727, %v1310
        %1312 = vmatprep.mubr.f32.mxu0 0.0
        %1313 = vmatmul.mubr.f32.gmra.mxu0 %v815
        %v1314 = vpop.f32.mrf.mxu0
        %v1315 = vadd.f32 %v723, %v1314
        %v1316 = vpop.f32.mrf.mxu0
        %v1317 = vadd.f32 %v727, %v1316
        %1318 = vmatprep.mubr.f32.mxu0 0.0
        %1319 = vmatmul.mubr.f32.gmra.mxu0 %v818
        %v1320 = vpop.f32.mrf.mxu0
        %v1321 = vadd.f32 %v723, %v1320
        %v1322 = vpop.f32.mrf.mxu0
        %v1323 = vadd.f32 %v727, %v1322
        %1324 = vmatprep.mubr.f32.mxu0 0.0
        %1325 = vmatmul.mubr.f32.gmra.mxu0 %v821
        %v1326 = vpop.f32.mrf.mxu0
        %v1327 = vadd.f32 %v723, %v1326
        %v1328 = vpop.f32.mrf.mxu0
        %v1329 = vadd.f32 %v727, %v1328
        %1330 = vmatprep.mubr.f32.mxu0 0.0
        %1331 = vmatmul.mubr.f32.gmra.mxu0 %v824
        %v1332 = vpop.f32.mrf.mxu0
        %v1333 = vadd.f32 %v723, %v1332
        %v1334 = vpop.f32.mrf.mxu0
        %v1335 = vadd.f32 %v727, %v1334
        %1336 = vmatprep.mubr.f32.mxu0 0.0
        %1337 = vmatmul.mubr.f32.gmra.mxu0 %v827
        %v1338 = vpop.f32.mrf.mxu0
        %v1339 = vadd.f32 %v723, %v1338
        %v1340 = vpop.f32.mrf.mxu0
        %v1341 = vadd.f32 %v727, %v1340
        %1342 = vdwg.mxu0
        %v1343 = vmax.f32 %v896, 0.0
        %v1344 = vmax.f32 %v898, 0.0
        %v1345 = vmax.f32 %v1153, 0.0
        %v1346 = vmax.f32 %v1155, 0.0
        %v1347 = vmax.f32 %v902, 0.0
        %v1348 = vmax.f32 %v904, 0.0
        %v1349 = vmax.f32 %v1159, 0.0
        %v1350 = vmax.f32 %v1161, 0.0
        %v1351 = vmax.f32 %v908, 0.0
        %v1352 = vmax.f32 %v910, 0.0
        %v1353 = vmax.f32 %v1165, 0.0
        %v1354 = vmax.f32 %v1167, 0.0
        %v1355 = vmax.f32 %v914, 0.0
        %v1356 = vmax.f32 %v916, 0.0
        %v1357 = vmax.f32 %v1171, 0.0
        %v1358 = vmax.f32 %v1173, 0.0
        %v1359 = vmax.f32 %v920, 0.0
        %v1360 = vmax.f32 %v922, 0.0
        %v1361 = vmax.f32 %v1177, 0.0
        %v1362 = vmax.f32 %v1179, 0.0
        %v1363 = vmax.f32 %v926, 0.0
        %v1364 = vmax.f32 %v928, 0.0
        %v1365 = vmax.f32 %v1183, 0.0
        %v1366 = vmax.f32 %v1185, 0.0
        %v1367 = vmax.f32 %v932, 0.0
        %v1368 = vmax.f32 %v934, 0.0
        %v1369 = vmax.f32 %v1189, 0.0
        %v1370 = vmax.f32 %v1191, 0.0
        %v1371 = vmax.f32 %v938, 0.0
        %v1372 = vmax.f32 %v940, 0.0
        %v1373 = vmax.f32 %v1195, 0.0
        %v1374 = vmax.f32 %v1197, 0.0
        %v1375 = vmax.f32 %v944, 0.0
        %v1376 = vmax.f32 %v946, 0.0
        %v1377 = vmax.f32 %v1201, 0.0
        %v1378 = vmax.f32 %v1203, 0.0
        %v1379 = vmax.f32 %v950, 0.0
        %v1380 = vmax.f32 %v952, 0.0
        %v1381 = vmax.f32 %v1207, 0.0
        %v1382 = vmax.f32 %v1209, 0.0
        %v1383 = vmax.f32 %v956, 0.0
        %v1384 = vmax.f32 %v958, 0.0
        %v1385 = vmax.f32 %v1213, 0.0
        %v1386 = vmax.f32 %v1215, 0.0
        %v1387 = vmax.f32 %v962, 0.0
        %v1388 = vmax.f32 %v964, 0.0
        %v1389 = vmax.f32 %v1219, 0.0
        %v1390 = vmax.f32 %v1221, 0.0
        %v1391 = vmax.f32 %v968, 0.0
        %v1392 = vmax.f32 %v970, 0.0
        %v1393 = vmax.f32 %v1225, 0.0
        %v1394 = vmax.f32 %v1227, 0.0
        %v1395 = vmax.f32 %v974, 0.0
        %v1396 = vmax.f32 %v976, 0.0
        %v1397 = vmax.f32 %v1231, 0.0
        %v1398 = vmax.f32 %v1233, 0.0
        %v1399 = vmax.f32 %v980, 0.0
        %v1400 = vmax.f32 %v982, 0.0
        %v1401 = vmax.f32 %v1237, 0.0
        %v1402 = vmax.f32 %v1239, 0.0
        %v1403 = vmax.f32 %v986, 0.0
        %v1404 = vmax.f32 %v988, 0.0
        %v1405 = vmax.f32 %v1243, 0.0
        %v1406 = vmax.f32 %v1245, 0.0
        %v1407 = vmax.f32 %v992, 0.0
        %v1408 = vmax.f32 %v994, 0.0
        %v1409 = vmax.f32 %v1249, 0.0
        %v1410 = vmax.f32 %v1251, 0.0
        %v1411 = vmax.f32 %v998, 0.0
        %v1412 = vmax.f32 %v1000, 0.0
        %v1413 = vmax.f32 %v1255, 0.0
        %v1414 = vmax.f32 %v1257, 0.0
        %v1415 = vmax.f32 %v1004, 0.0
        %v1416 = vmax.f32 %v1006, 0.0
        %v1417 = vmax.f32 %v1261, 0.0
        %v1418 = vmax.f32 %v1263, 0.0
        %v1419 = vmax.f32 %v1010, 0.0
        %v1420 = vmax.f32 %v1012, 0.0
        %v1421 = vmax.f32 %v1267, 0.0
        %v1422 = vmax.f32 %v1269, 0.0
        %v1423 = vmax.f32 %v1016, 0.0
        %v1424 = vmax.f32 %v1018, 0.0
        %v1425 = vmax.f32 %v1273, 0.0
        %v1426 = vmax.f32 %v1275, 0.0
        %v1427 = vmax.f32 %v1022, 0.0
        %v1428 = vmax.f32 %v1024, 0.0
        %v1429 = vmax.f32 %v1279, 0.0
        %v1430 = vmax.f32 %v1281, 0.0
        %v1431 = vmax.f32 %v1028, 0.0
        %v1432 = vmax.f32 %v1030, 0.0
        %v1433 = vmax.f32 %v1285, 0.0
        %v1434 = vmax.f32 %v1287, 0.0
        %v1435 = vmax.f32 %v1034, 0.0
        %v1436 = vmax.f32 %v1036, 0.0
        %v1437 = vmax.f32 %v1291, 0.0
        %v1438 = vmax.f32 %v1293, 0.0
        %v1439 = vmax.f32 %v1040, 0.0
        %v1440 = vmax.f32 %v1042, 0.0
        %v1441 = vmax.f32 %v1297, 0.0
        %v1442 = vmax.f32 %v1299, 0.0
        %v1443 = vmax.f32 %v1046, 0.0
        %v1444 = vmax.f32 %v1048, 0.0
        %v1445 = vmax.f32 %v1303, 0.0
        %v1446 = vmax.f32 %v1305, 0.0
        %v1447 = vmax.f32 %v1052, 0.0
        %v1448 = vmax.f32 %v1054, 0.0
        %v1449 = vmax.f32 %v1309, 0.0
        %v1450 = vmax.f32 %v1311, 0.0
        %v1451 = vmax.f32 %v1058, 0.0
        %v1452 = vmax.f32 %v1060, 0.0
        %v1453 = vmax.f32 %v1315, 0.0
        %v1454 = vmax.f32 %v1317, 0.0
        %v1455 = vmax.f32 %v1064, 0.0
        %v1456 = vmax.f32 %v1066, 0.0
        %v1457 = vmax.f32 %v1321, 0.0
        %v1458 = vmax.f32 %v1323, 0.0
        %v1459 = vmax.f32 %v1070, 0.0
        %v1460 = vmax.f32 %v1072, 0.0
        %v1461 = vmax.f32 %v1327, 0.0
        %v1462 = vmax.f32 %v1329, 0.0
        %v1463 = vmax.f32 %v1076, 0.0
        %v1464 = vmax.f32 %v1078, 0.0
        %v1465 = vmax.f32 %v1333, 0.0
        %v1466 = vmax.f32 %v1335, 0.0
        %v1467 = vmax.f32 %v1082, 0.0
        %v1468 = vmax.f32 %v1084, 0.0
        %v1469 = vmax.f32 %v1339, 0.0
        %v1470 = vmax.f32 %v1341, 0.0
        %1471 = vst [vmem:[%s273] sm:$0xff] %v1343
        %1472 = vst [vmem:[%s273 + $0x8] sm:$0xff] %v1344
        %1473 = vst [vmem:[%s273 + $0x10] sm:$0xff] %v1345
        %1474 = vst [vmem:[%s273 + $0x18] sm:$0xff] %v1346
        %1475 = vst [vmem:[%s273 + $0x20] sm:$0xff] %v1347
        %1476 = vst [vmem:[%s273 + $0x28] sm:$0xff] %v1348
        %1477 = vst [vmem:[%s273 + $0x30] sm:$0xff] %v1349
        %1478 = vst [vmem:[%s273 + $0x38] sm:$0xff] %v1350
        %1479 = vst [vmem:[%s273 + $0x40] sm:$0xff] %v1351
        %1480 = vst [vmem:[%s273 + $0x48] sm:$0xff] %v1352
        %1481 = vst [vmem:[%s273 + $0x50] sm:$0xff] %v1353
        %1482 = vst [vmem:[%s273 + $0x58] sm:$0xff] %v1354
        %1483 = vst [vmem:[%s273 + $0x60] sm:$0xff] %v1355
        %1484 = vst [vmem:[%s273 + $0x68] sm:$0xff] %v1356
        %1485 = vst [vmem:[%s273 + $0x70] sm:$0xff] %v1357
        %1486 = vst [vmem:[%s273 + $0x78] sm:$0xff] %v1358
        %1487 = vst [vmem:[%s273 + $0x80] sm:$0xff] %v1359
        %1488 = vst [vmem:[%s273 + $0x88] sm:$0xff] %v1360
        %1489 = vst [vmem:[%s273 + $0x90] sm:$0xff] %v1361
        %1490 = vst [vmem:[%s273 + $0x98] sm:$0xff] %v1362
        %1491 = vst [vmem:[%s273 + $0xa0] sm:$0xff] %v1363
        %1492 = vst [vmem:[%s273 + $0xa8] sm:$0xff] %v1364
        %1493 = vst [vmem:[%s273 + $0xb0] sm:$0xff] %v1365
        %1494 = vst [vmem:[%s273 + $0xb8] sm:$0xff] %v1366
        %1495 = vst [vmem:[%s273 + $0xc0] sm:$0xff] %v1367
        %1496 = vst [vmem:[%s273 + $0xc8] sm:$0xff] %v1368
        %1497 = vst [vmem:[%s273 + $0xd0] sm:$0xff] %v1369
        %1498 = vst [vmem:[%s273 + $0xd8] sm:$0xff] %v1370
        %1499 = vst [vmem:[%s273 + $0xe0] sm:$0xff] %v1371
        %1500 = vst [vmem:[%s273 + $0xe8] sm:$0xff] %v1372
        %1501 = vst [vmem:[%s273 + $0xf0] sm:$0xff] %v1373
        %1502 = vst [vmem:[%s273 + $0xf8] sm:$0xff] %v1374
        %1503 = vst [vmem:[%s273 + $0x100] sm:$0xff] %v1375
        %1504 = vst [vmem:[%s273 + $0x108] sm:$0xff] %v1376
        %1505 = vst [vmem:[%s273 + $0x110] sm:$0xff] %v1377
        %1506 = vst [vmem:[%s273 + $0x118] sm:$0xff] %v1378
        %1507 = vst [vmem:[%s273 + $0x120] sm:$0xff] %v1379
        %1508 = vst [vmem:[%s273 + $0x128] sm:$0xff] %v1380
        %1509 = vst [vmem:[%s273 + $0x130] sm:$0xff] %v1381
        %1510 = vst [vmem:[%s273 + $0x138] sm:$0xff] %v1382
        %1511 = vst [vmem:[%s273 + $0x140] sm:$0xff] %v1383
        %1512 = vst [vmem:[%s273 + $0x148] sm:$0xff] %v1384
        %1513 = vst [vmem:[%s273 + $0x150] sm:$0xff] %v1385
        %1514 = vst [vmem:[%s273 + $0x158] sm:$0xff] %v1386
        %1515 = vst [vmem:[%s273 + $0x160] sm:$0xff] %v1387
        %1516 = vst [vmem:[%s273 + $0x168] sm:$0xff] %v1388
        %1517 = vst [vmem:[%s273 + $0x170] sm:$0xff] %v1389
        %1518 = vst [vmem:[%s273 + $0x178] sm:$0xff] %v1390
        %1519 = vst [vmem:[%s273 + $0x180] sm:$0xff] %v1391
        %1520 = vst [vmem:[%s273 + $0x188] sm:$0xff] %v1392
        %1521 = vst [vmem:[%s273 + $0x190] sm:$0xff] %v1393
        %1522 = vst [vmem:[%s273 + $0x198] sm:$0xff] %v1394
        %1523 = vst [vmem:[%s273 + $0x1a0] sm:$0xff] %v1395
        %1524 = vst [vmem:[%s273 + $0x1a8] sm:$0xff] %v1396
        %1525 = vst [vmem:[%s273 + $0x1b0] sm:$0xff] %v1397
        %1526 = vst [vmem:[%s273 + $0x1b8] sm:$0xff] %v1398
        %1527 = vst [vmem:[%s273 + $0x1c0] sm:$0xff] %v1399
        %1528 = vst [vmem:[%s273 + $0x1c8] sm:$0xff] %v1400
        %1529 = vst [vmem:[%s273 + $0x1d0] sm:$0xff] %v1401
        %1530 = vst [vmem:[%s273 + $0x1d8] sm:$0xff] %v1402
        %1531 = vst [vmem:[%s273 + $0x1e0] sm:$0xff] %v1403
        %1532 = vst [vmem:[%s273 + $0x1e8] sm:$0xff] %v1404
        %1533 = vst [vmem:[%s273 + $0x1f0] sm:$0xff] %v1405
        %1534 = vst [vmem:[%s273 + $0x1f8] sm:$0xff] %v1406
        %1535 = vst [vmem:[%s273 + $0x200] sm:$0xff] %v1407
        %1536 = vst [vmem:[%s273 + $0x208] sm:$0xff] %v1408
        %1537 = vst [vmem:[%s273 + $0x210] sm:$0xff] %v1409
        %1538 = vst [vmem:[%s273 + $0x218] sm:$0xff] %v1410
        %1539 = vst [vmem:[%s273 + $0x220] sm:$0xff] %v1411
        %1540 = vst [vmem:[%s273 + $0x228] sm:$0xff] %v1412
        %1541 = vst [vmem:[%s273 + $0x230] sm:$0xff] %v1413
        %1542 = vst [vmem:[%s273 + $0x238] sm:$0xff] %v1414
        %1543 = vst [vmem:[%s273 + $0x240] sm:$0xff] %v1415
        %1544 = vst [vmem:[%s273 + $0x248] sm:$0xff] %v1416
        %1545 = vst [vmem:[%s273 + $0x250] sm:$0xff] %v1417
        %1546 = vst [vmem:[%s273 + $0x258] sm:$0xff] %v1418
        %1547 = vst [vmem:[%s273 + $0x260] sm:$0xff] %v1419
        %1548 = vst [vmem:[%s273 + $0x268] sm:$0xff] %v1420
        %1549 = vst [vmem:[%s273 + $0x270] sm:$0xff] %v1421
        %1550 = vst [vmem:[%s273 + $0x278] sm:$0xff] %v1422
        %1551 = vst [vmem:[%s273 + $0x280] sm:$0xff] %v1423
        %1552 = vst [vmem:[%s273 + $0x288] sm:$0xff] %v1424
        %1553 = vst [vmem:[%s273 + $0x290] sm:$0xff] %v1425
        %1554 = vst [vmem:[%s273 + $0x298] sm:$0xff] %v1426
        %1555 = vst [vmem:[%s273 + $0x2a0] sm:$0xff] %v1427
        %1556 = vst [vmem:[%s273 + $0x2a8] sm:$0xff] %v1428
        %1557 = vst [vmem:[%s273 + $0x2b0] sm:$0xff] %v1429
        %1558 = vst [vmem:[%s273 + $0x2b8] sm:$0xff] %v1430
        %1559 = vst [vmem:[%s273 + $0x2c0] sm:$0xff] %v1431
        %1560 = vst [vmem:[%s273 + $0x2c8] sm:$0xff] %v1432
        %1561 = vst [vmem:[%s273 + $0x2d0] sm:$0xff] %v1433
        %1562 = vst [vmem:[%s273 + $0x2d8] sm:$0xff] %v1434
        %1563 = vst [vmem:[%s273 + $0x2e0] sm:$0xff] %v1435
        %1564 = vst [vmem:[%s273 + $0x2e8] sm:$0xff] %v1436
        %1565 = vst [vmem:[%s273 + $0x2f0] sm:$0xff] %v1437
        %1566 = vst [vmem:[%s273 + $0x2f8] sm:$0xff] %v1438
        %1567 = vst [vmem:[%s273 + $0x300] sm:$0xff] %v1439
        %1568 = vst [vmem:[%s273 + $0x308] sm:$0xff] %v1440
        %1569 = vst [vmem:[%s273 + $0x310] sm:$0xff] %v1441
        %1570 = vst [vmem:[%s273 + $0x318] sm:$0xff] %v1442
        %1571 = vst [vmem:[%s273 + $0x320] sm:$0xff] %v1443
        %1572 = vst [vmem:[%s273 + $0x328] sm:$0xff] %v1444
        %1573 = vst [vmem:[%s273 + $0x330] sm:$0xff] %v1445
        %1574 = vst [vmem:[%s273 + $0x338] sm:$0xff] %v1446
        %1575 = vst [vmem:[%s273 + $0x340] sm:$0xff] %v1447
        %1576 = vst [vmem:[%s273 + $0x348] sm:$0xff] %v1448
        %1577 = vst [vmem:[%s273 + $0x350] sm:$0xff] %v1449
        %1578 = vst [vmem:[%s273 + $0x358] sm:$0xff] %v1450
        %1579 = vst [vmem:[%s273 + $0x360] sm:$0xff] %v1451
        %1580 = vst [vmem:[%s273 + $0x368] sm:$0xff] %v1452
        %1581 = vst [vmem:[%s273 + $0x370] sm:$0xff] %v1453
        %1582 = vst [vmem:[%s273 + $0x378] sm:$0xff] %v1454
        %1583 = vst [vmem:[%s273 + $0x380] sm:$0xff] %v1455
        %1584 = vst [vmem:[%s273 + $0x388] sm:$0xff] %v1456
        %1585 = vst [vmem:[%s273 + $0x390] sm:$0xff] %v1457
        %1586 = vst [vmem:[%s273 + $0x398] sm:$0xff] %v1458
        %1587 = vst [vmem:[%s273 + $0x3a0] sm:$0xff] %v1459
        %1588 = vst [vmem:[%s273 + $0x3a8] sm:$0xff] %v1460
        %1589 = vst [vmem:[%s273 + $0x3b0] sm:$0xff] %v1461
        %1590 = vst [vmem:[%s273 + $0x3b8] sm:$0xff] %v1462
        %1591 = vst [vmem:[%s273 + $0x3c0] sm:$0xff] %v1463
        %1592 = vst [vmem:[%s273 + $0x3c8] sm:$0xff] %v1464
        %1593 = vst [vmem:[%s273 + $0x3d0] sm:$0xff] %v1465
        %1594 = vst [vmem:[%s273 + $0x3d8] sm:$0xff] %v1466
        %1595 = vst [vmem:[%s273 + $0x3e0] sm:$0xff] %v1467
        %1596 = vst [vmem:[%s273 + $0x3e8] sm:$0xff] %v1468
        %1597 = vst [vmem:[%s273 + $0x3f0] sm:$0xff] %v1469
        %1598 = vst [vmem:[%s273 + $0x3f8] sm:$0xff] %v1470
        %s1599 = sand.u32 %s140, 1
        %s1600 = scalar_lea.sflag [#allocation4], %s1599
        %s1601 = sand.u32 %s140, 1
        %s1602 = smul.addr %s1601, 1024
        %s1603 = scalar_lea.vmem [#allocation10], %s1602
        // Predicated region
        $region57: #{tpu_custom_call.1} parent=39 // pred_check
          %p1604 = pneg %p150
        $region58: #{tpu_custom_call.1} parent=39 // pred_check_branch
          %1606 = sbr.rel (%p1604) target = $region60
        $region59: #{tpu_custom_call.1} parent=39 // pred_region
          %s1607 = smul.u32 32, %s22
          %s1609 = ssub.s32 16384, 16384
          %1610 = vsyncadd %s1600, %s1609
          %s1611 = smul.addr %s1607, 4
          %s1612 = smul.addr %s1611, 128
          %s1613 = scalar_lea.hbm %s5, %s1612
          %s1614 = sshll.u32 %s1603, 4
          %s1615 = int_to_ptr.vmem [resolvable:$true] %s1614
          %1620 = dma.vmem_to_hbm [thread:$0]  %s1615, 16384, %s1613, %s1600, 512, 512, 32
        $region60: #{tpu_custom_call.1} parent=39 // pred_fallthru
          _
      $region40: #{tpu_custom_call.1} parent=5 // pred_fallthru
        _
      %p1621 = scmp.le.s32.totalorder 2, %s17
      // Predicated region
      $region61: #{tpu_custom_call.1} parent=5 // pred_check
        %p1622 = pneg %p1621
      $region62: #{tpu_custom_call.1} parent=5 // pred_check_branch
        %1624 = sbr.rel (%p1622) target = $region64
      $region63: #{tpu_custom_call.1} parent=5 // pred_region
        %s1625 = ssub.s32 %s17, 2
        // Predicated region
        $region65: #{tpu_custom_call.1} parent=63 // pred_check
          %p1626 = pneg %p156
        $region66: #{tpu_custom_call.1} parent=63 // pred_check_branch
          %1628 = sbr.rel (%p1626) target = $region68
        $region67: #{tpu_custom_call.1} parent=63 // pred_region
          %s1629 = sand.u32 %s141, 1
          %s1630 = scalar_lea.sflag [#allocation4], %s1629
          %s1631 = sand.u32 %s141, 1
          %s1632 = smul.addr %s1631, 1024
          %s1633 = scalar_lea.vmem [#allocation10], %s1632
          %1634 = dma.done %s1630, 16384
        $region68: #{tpu_custom_call.1} parent=63 // pred_fallthru
          _
      $region64: #{tpu_custom_call.1} parent=5 // pred_fallthru
        _
    $region6: #{tpu_custom_call.1} parent=1 // loop_footer
      %s21 = sadd.s32 1, %s17
    $region7: #{tpu_custom_call.1} parent=1 // loop_footer_branch
      %16 = sbr.rel target = $region3
    $region8: #{tpu_custom_call.1} parent=1 // loop_exit
      _
    %1635 = vsyncpa [#allocation3], 1
    %s1636 = scalar_lea.sflag [#allocation3], 1
    %1637 = vsyncpa %s1636, 1
    %1638 = vsyncpa [#allocation6], 1
    %1639 = vsyncpa [#allocation9], 1
    %1640 = vsyncpa [#allocation4], 1
    %s1641 = scalar_lea.sflag [#allocation4], 1
    %1642 = vsyncpa %s1641, 1

</llo_original>
